<compile_context>
chip_gen: v5e
topology: v5e:2x2
jax: 0.10.0
libtpu: 0.0.40
codegen_flags: <defaults>
</compile_context>

<pallas_src>
import functools

import jax
import jax.numpy as jnp
from jax import lax
from jax.experimental import pallas as pl
from jax.experimental.pallas import tpu as pltpu


def _encoder_kernel(yfz_ref, ids_ref, wstat_ref, bstat_ref, delta_ref,
                    whx_ref, bhn_ref, wx0n_ref, wo_ref, bo_ref,
                    hn_ref, xn_ref, gxs_ref, *, hist_len, n_rows, hp, feat_w):
    N = n_rows          # padded rows per timestep (multiple of 8)
    Hp = hp             # 128-lane-aligned gate/hidden slab width
    R = hist_len * N    # all history rows

    # ---------- static pass: ONE fused matmul for all history steps ----------
    # yfz has [y, feats] in lanes [0, F) and zeros in lanes [F, F+NE); the
    # one-hot of the spatial id (shifted by F) is added in-register, so the
    # whole static projection is a single (R, F+NE) x (F+NE, 3*Hp) MXU matmul.
    width = yfz_ref.shape[1]
    lane = lax.broadcasted_iota(jnp.int32, (R, width), 1)
    lhs = yfz_ref[...] + (lane == ids_ref[...] + feat_w).astype(jnp.float32)
    gxs_ref[...] = (
        jnp.dot(lhs, wstat_ref[...], preferred_element_type=jnp.float32)
        + bstat_ref[...])                                            # (R, 3*Hp)

    whx = whx_ref[...]     # (Hp, 4*Hp) W_hh with xn->r,z fold + h@wo slab
    bhn = bhn_ref[...]     # (1, Hp)    b_hn (stays inside r * (.))
    wx0n = wx0n_ref[...]   # (1, Hp)    xn column of W_ih, n gate only
    delta = delta_ref[...] # (1, 3*Hp)  bo * wx0 (already folded into bstat)

    # ---------- t = 0: h = 0 and xn = 0, so no hidden matmul and no bo*wx0 ----
    g0 = gxs_ref[pl.ds(0, N), :] - delta
    r = jax.nn.sigmoid(g0[:, :Hp])
    z = jax.nn.sigmoid(g0[:, Hp:2 * Hp])
    n = jnp.tanh(g0[:, 2 * Hp:] + r * bhn)
    h = (1.0 - z) * n

    # ---------- t >= 1: one MXU matmul per step, nothing else on the XLU ----
    # hist_len is small, so a full static unroll is ideal for LLO scheduling;
    # switch to lax.fori_loop(..., unroll=k) if hist_len ever grows past ~32.
    for t in range(1, hist_len):
        gx = gxs_ref[pl.ds(t * N, N), :]                             # (N, 3*Hp)
        G = jnp.dot(h, whx, preferred_element_type=jnp.float32)      # (N, 4*Hp)
        r = jax.nn.sigmoid(gx[:, :Hp] + G[:, :Hp])
        z = jax.nn.sigmoid(gx[:, Hp:2 * Hp] + G[:, Hp:2 * Hp])
        # G[:, 3Hp:] carries h @ wo replicated over all lanes (from the MXU),
        # so the xn -> n-gate term is a plain VPU multiply-add.
        n = jnp.tanh(gx[:, 2 * Hp:] + G[:, 3 * Hp:] * wx0n
                     + r * (G[:, 2 * Hp:3 * Hp] + bhn))
        h = (1.0 - z) * n + z * h

    hn_ref[...] = h                                                  # (N, Hp)
    # fc_out once, after the last step (single XLU reduction, off the loop).
    xn_ref[...] = jnp.sum(h * wo_ref[...], axis=-1, keepdims=True) + bo_ref[...]


def prepare_encoder_params(params, *, hid_dim, num_embeddings):
    """One-time weight preprocessing (pad / fold). Cache the result per model;
    none of this runs in the per-call hot path."""
    H = hid_dim
    Hp = ((H + 127) // 128) * 128
    wx_t, wh_t = params["wx_t"], params["wh_t"]          # (I, 3H), (H, 3H)
    bx, bh = params["bx"], params["bh"]                  # (1, 3H)
    wo_t, bo = params["wo_t"], params["bo"]              # (H, 1), (1, 1)
    emb = params["emb"]                                  # (NE, E)
    E = emb.shape[1]
    F = wx_t.shape[0] - 1 - E                            # width of [y, feats]

    def pad_gates(w):    # (..., 3H) -> (..., 3*Hp): each gate in a 128 slab
        parts = []
        for g in range(3):
            blk = w[..., g * H:(g + 1) * H]
            parts.append(jnp.pad(blk, [(0, 0)] * (w.ndim - 1) + [(0, Hp - H)]))
        return jnp.concatenate(parts, axis=-1)

    # W_ih rows correspond to the concat order [xn, y, feats, emb].
    wx0 = pad_gates(wx_t[0:1, :])                                    # (1, 3Hp)
    wyf = pad_gates(wx_t[1:1 + F, :])                                # (F, 3Hp)
    wemb = pad_gates(jnp.dot(emb, wx_t[1 + F:1 + F + E, :],
                             precision=lax.Precision.HIGHEST))       # (NE, 3Hp)
    wstat = jnp.concatenate([wyf, wemb], axis=0)                     # (F+NE, 3Hp)

    # Fold b_ih (all gates) + b_hh (r,z only) + the fc_out feedback bias
    # bo*wx0 into one static bias row; the kernel subtracts bo*wx0 at t=0
    # (where xn starts at 0).  b_hn stays inside r * (gh_n + b_hn).
    bh_rz = jnp.concatenate([bh[:, :2 * H], jnp.zeros((1, H), bh.dtype)], axis=-1)
    delta = bo[0, 0] * wx0                                           # (1, 3Hp)
    bstat = pad_gates(bx + bh_rz) + delta                            # (1, 3Hp)
    bhn = jnp.pad(bh[:, 2 * H:], ((0, 0), (0, Hp - H)))              # (1, Hp)

    # Extended hidden weight: [W_hh_r + wo@wx0_r, W_hh_z + wo@wx0_z, W_hh_n,
    #                          wo replicated over all Hp lanes].
    wo_col = jnp.pad(wo_t, ((0, Hp - H), (0, 0)))                    # (Hp, 1)
    whp = pad_gates(jnp.pad(wh_t, ((0, Hp - H), (0, 0))))            # (Hp, 3Hp)
    fold = wo_col @ wx0                                              # (Hp, 3Hp)
    whx = jnp.concatenate(
        [whp[:, :2 * Hp] + fold[:, :2 * Hp],     # r, z gates: xn fold exact
         whp[:, 2 * Hp:],                        # n gate: must stay unfolded
         jnp.broadcast_to(wo_col, (Hp, Hp))],    # 4th slab: h@wo in every lane
        axis=-1)                                                     # (Hp, 4Hp)

    return {
        "wstat": wstat, "bstat": bstat, "delta": delta, "whx": whx,
        "bhn": bhn, "wx0n": wx0[:, 2 * Hp:],
        "wo_row": jnp.pad(wo_t.T, ((0, 0), (0, Hp - H))), "bo": bo,
    }


def encoder_forward(X, y, prep, *, hist_len, hid_dim, num_embeddings):
    """X: (B, T, C, F) float32, y: (B, T, C, 1) float32. Returns (hn, xn).
    `prep` comes from prepare_encoder_params (computed once per model)."""
    B, T, C, F = X.shape
    N = B * C
    Npad = ((N + 7) // 8) * 8                  # sublane-align rows per step
    H = hid_dim
    Hp = ((H + 127) // 128) * 128
    NE = num_embeddings
    R = hist_len * Npad

    # ---- per-call input plumbing (layout only): time-major, (B,C)->N ----
    Xh = X[:, :hist_len].astype(jnp.float32)
    yh = y[:, :hist_len].astype(jnp.float32)
    feats = Xh[..., :F - 1]                                 # (B, hist, C, F-1)
    ids = Xh[..., F - 1].astype(jnp.int32)                  # (B, hist, C)

    # [y, feats, 0...0]: zero lanes reserve room for the in-kernel one-hot.
    yfz = jnp.concatenate(
        [yh, feats, jnp.zeros(yh.shape[:-1] + (NE,), jnp.float32)], axis=-1)
    yfz = jnp.transpose(yfz, (1, 0, 2, 3)).reshape(hist_len, N, F + NE)
    ids2 = jnp.transpose(ids, (1, 0, 2)).reshape(hist_len, N, 1)
    if Npad != N:
        yfz = jnp.pad(yfz, ((0, 0), (0, Npad - N), (0, 0)))
        ids2 = jnp.pad(ids2, ((0, 0), (0, Npad - N), (0, 0)))
    yfz = yfz.reshape(R, F + NE)
    ids2 = ids2.reshape(R, 1)

    kernel = functools.partial(_encoder_kernel, hist_len=hist_len,
                               n_rows=Npad, hp=Hp, feat_w=F)
    vmem = pltpu.MemorySpace.VMEM

    # Single program: N = B*C is tiny here.  If N grows, add a grid over the
    # row axis with dimension_semantics=("parallel",) (v7x: 2 TensorCores) and
    # bound the gxs scratch (R * 3*Hp * 4 bytes) against the VMEM limit.
    hn_pad, xn_pad = pl.pallas_call(
        kernel,
        out_shape=(jax.ShapeDtypeStruct((Npad, Hp), jnp.float32),
                   jax.ShapeDtypeStruct((Npad, 1), jnp.float32)),
        in_specs=[pl.BlockSpec(memory_space=vmem)] * 10,
        out_specs=(pl.BlockSpec(memory_space=vmem),
                   pl.BlockSpec(memory_space=vmem)),
        scratch_shapes=[pltpu.VMEM((R, 3 * Hp), jnp.float32)],
    )(yfz, ids2, prep["wstat"], prep["bstat"], prep["delta"], prep["whx"],
      prep["bhn"], prep["wx0n"], prep["wo_row"], prep["bo"])

    return hn_pad[:N, :H], xn_pad[:N].reshape(B, C, 1)


def encoder_reference(X, y, params, *, hist_len, hid_dim):
    """Pure-JAX reference matching the PyTorch forward."""
    B, T, C, F = X.shape
    N = B * C
    H = hid_dim
    hn = jnp.zeros((N, H), jnp.float32)
    xn = jnp.zeros((B, C, 1), jnp.float32)
    for i in range(hist_len):
        idx = X[:, i, :, -1].astype(jnp.int32)
        emb = params["emb"][idx]                                   # (B, C, E)
        x = jnp.concatenate([xn, y[:, i], X[:, i, :, :-1], emb], axis=-1)
        x = x.reshape(N, -1)
        gx = x @ params["wx_t"] + params["bx"]
        gh = hn @ params["wh_t"] + params["bh"]
        r = jax.nn.sigmoid(gx[:, :H] + gh[:, :H])
        z = jax.nn.sigmoid(gx[:, H:2 * H] + gh[:, H:2 * H])
        n = jnp.tanh(gx[:, 2 * H:] + r * gh[:, 2 * H:])
        hn = (1.0 - z) * n + z * hn
        xn = (hn @ params["wo_t"] + params["bo"]).reshape(B, C, 1)
    return hn, xn


if __name__ == "__main__":
    # Small shapes consistent with the module.
    B, C = 2, 8                 # batch_size, city_num
    in_dim = 4                  # num_features (last one is an embedding id)
    emb_dim = 8
    hid_dim = 32
    num_embeddings = 10
    hist_len = 6
    T = hist_len + 2            # hist_len + forecast_len
    in_feat = in_dim - 1 + emb_dim + 2

    key = jax.random.PRNGKey(0)
    k = jax.random.split(key, 10)

    # Deterministic synthetic parameters (shapes match the PyTorch module).
    params = {
        "emb":  0.1 * jax.random.normal(k[0], (num_embeddings, emb_dim), jnp.float32),
        # stored pre-transposed: (in_feat, 3H) and (H, 3H); gate order r, z, n.
        "wx_t": 0.1 * jax.random.normal(k[1], (in_feat, 3 * hid_dim), jnp.float32),
        "wh_t": 0.1 * jax.random.normal(k[2], (hid_dim, 3 * hid_dim), jnp.float32),
        "bx":   0.1 * jax.random.normal(k[3], (1, 3 * hid_dim), jnp.float32),
        "bh":   0.1 * jax.random.normal(k[4], (1, 3 * hid_dim), jnp.float32),
        "wo_t": 0.1 * jax.random.normal(k[5], (hid_dim, 1), jnp.float32),
        "bo":   0.1 * jax.random.normal(k[6], (1, 1), jnp.float32),
    }

    # Inputs: real-valued features plus an integer-valued embedding id in the
    # last feature slot (the PyTorch code calls .long() on X[..., -1]).
    feats = jax.random.normal(k[7], (B, T, C, in_dim - 1), jnp.float32)
    ids = jax.random.randint(k[8], (B, T, C, 1), 0, num_embeddings).astype(jnp.float32)
    X = jnp.concatenate([feats, ids], axis=-1)              # (B, T, C, in_dim)
    y = jax.random.normal(k[9], (B, T, C, 1), jnp.float32)  # (B, T, C, 1)

    # One-time weight preprocessing (hoisted out of the per-call hot path).
    prep = prepare_encoder_params(params, hid_dim=hid_dim,
                                  num_embeddings=num_embeddings)
    prep = jax.tree_util.tree_map(jnp.asarray, prep)
    jax.block_until_ready(prep)

    fwd = jax.jit(functools.partial(encoder_forward, hist_len=hist_len,
                                    hid_dim=hid_dim,
                                    num_embeddings=num_embeddings))
    hn, xn = fwd(X, y, prep)
    jax.block_until_ready((hn, xn))

    hn_ref, xn_ref = encoder_reference(X, y, params, hist_len=hist_len, hid_dim=hid_dim)
    assert hn.shape == (B * C, hid_dim) and xn.shape == (B, C, 1)
    assert jnp.allclose(hn, hn_ref, atol=2e-5, rtol=2e-5)
    assert jnp.allclose(xn, xn_ref, atol=2e-5, rtol=2e-5)

    print("KERNEL_OK")
</pallas_src>

<mosaic_0001>
module attributes {stable_mosaic.version = 11 : i64} {
  func.func @_encoder_kernel(%arg0: memref<96x14xf32, #tpu.memory_space<vmem>>, %arg1: memref<96x1xi32, #tpu.memory_space<vmem>>, %arg2: memref<14x384xf32, #tpu.memory_space<vmem>>, %arg3: memref<1x384xf32, #tpu.memory_space<vmem>>, %arg4: memref<1x384xf32, #tpu.memory_space<vmem>>, %arg5: memref<128x512xf32, #tpu.memory_space<vmem>>, %arg6: memref<1x128xf32, #tpu.memory_space<vmem>>, %arg7: memref<1x128xf32, #tpu.memory_space<vmem>>, %arg8: memref<1x128xf32, #tpu.memory_space<vmem>>, %arg9: memref<1x1xf32, #tpu.memory_space<vmem>>, %arg10: memref<16x128xf32, #tpu.memory_space<vmem>>, %arg11: memref<16x1xf32, #tpu.memory_space<vmem>>, %arg12: memref<96x384xf32, #tpu.memory_space<vmem>>) attributes {dimension_semantics = [], scalar_prefetch = 0 : i64, scratch_operands = 1 : i64, tpu.core_type = #tpu.core_type<tc>} {
    %0 = tpu.iota {dimensions = array<i32: 1>} : vector<96x14xi32>
    %c0 = arith.constant 0 : index
    %c0_0 = arith.constant 0 : index
    %1 = vector.load %arg0[%c0, %c0_0] : memref<96x14xf32, #tpu.memory_space<vmem>>, vector<96x14xf32>
    %c0_1 = arith.constant 0 : index
    %c0_2 = arith.constant 0 : index
    %2 = vector.load %arg1[%c0_1, %c0_2] : memref<96x1xi32, #tpu.memory_space<vmem>>, vector<96x1xi32>
    %c4_i32 = arith.constant 4 : i32
    %3 = vector.broadcast %c4_i32 : i32 to vector<96x1xi32>
    %4 = arith.addi %2, %3 : vector<96x1xi32>
    %5 = vector.broadcast %4 : vector<96x1xi32> to vector<96x14xi32>
    %6 = arith.cmpi eq, %0, %5 : vector<96x14xi32>
    %7 = arith.extui %6 : vector<96x14xi1> to vector<96x14xi32>
    %8 = arith.sitofp %7 : vector<96x14xi32> to vector<96x14xf32>
    %9 = arith.addf %1, %8 : vector<96x14xf32>
    %c0_3 = arith.constant 0 : index
    %c0_4 = arith.constant 0 : index
    %10 = vector.load %arg2[%c0_3, %c0_4] : memref<14x384xf32, #tpu.memory_space<vmem>>, vector<14x384xf32>
    %cst = arith.constant dense<0.000000e+00> : vector<96x384xf32>
    %11 = tpu.matmul %9, %10, %cst {dimension_numbers = #tpu.dot_dimension_numbers<[1], [0], [0], [1], [0, 0, 1, 1], [], []>} : vector<96x14xf32>, vector<14x384xf32>, vector<96x384xf32> -> vector<96x384xf32>
    %c0_5 = arith.constant 0 : index
    %c0_6 = arith.constant 0 : index
    %12 = vector.load %arg3[%c0_5, %c0_6] : memref<1x384xf32, #tpu.memory_space<vmem>>, vector<1x384xf32>
    %13 = vector.broadcast %12 : vector<1x384xf32> to vector<96x384xf32>
    %14 = arith.addf %11, %13 : vector<96x384xf32>
    %c0_7 = arith.constant 0 : index
    %c0_8 = arith.constant 0 : index
    %15 = vector.load %arg12[%c0_7, %c0_8] : memref<96x384xf32, #tpu.memory_space<vmem>>, vector<96x384xf32>
    tpu.vector_store %arg12[%c0_7, %c0_8], %14 {strides = array<i32>} : memref<96x384xf32, #tpu.memory_space<vmem>>, vector<96x384xf32>,
    %c0_9 = arith.constant 0 : index
    %c0_10 = arith.constant 0 : index
    %16 = vector.load %arg5[%c0_9, %c0_10] : memref<128x512xf32, #tpu.memory_space<vmem>>, vector<128x512xf32>
    %c0_11 = arith.constant 0 : index
    %c0_12 = arith.constant 0 : index
    %17 = vector.load %arg6[%c0_11, %c0_12] : memref<1x128xf32, #tpu.memory_space<vmem>>, vector<1x128xf32>
    %c0_13 = arith.constant 0 : index
    %c0_14 = arith.constant 0 : index
    %18 = vector.load %arg7[%c0_13, %c0_14] : memref<1x128xf32, #tpu.memory_space<vmem>>, vector<1x128xf32>
    %c0_15 = arith.constant 0 : index
    %c0_16 = arith.constant 0 : index
    %19 = vector.load %arg4[%c0_15, %c0_16] : memref<1x384xf32, #tpu.memory_space<vmem>>, vector<1x384xf32>
    %c0_17 = arith.constant 0 : index
    %c0_18 = arith.constant 0 : index
    %20 = vector.load %arg12[%c0_17, %c0_18] : memref<96x384xf32, #tpu.memory_space<vmem>>, vector<16x384xf32>
    %21 = vector.broadcast %19 : vector<1x384xf32> to vector<16x384xf32>
    %22 = arith.subf %20, %21 : vector<16x384xf32>
    %23 = vector.extract_strided_slice %22 {offsets = [0, 0], sizes = [16, 128], strides = [1, 1]} : vector<16x384xf32> to vector<16x128xf32>
    %24 = arith.negf %23 : vector<16x128xf32>
    %25 = math.exp %24 : vector<16x128xf32>
    %cst_19 = arith.constant 1.000000e+00 : f32
    %26 = vector.broadcast %cst_19 : f32 to vector<16x128xf32>
    %27 = arith.addf %26, %25 : vector<16x128xf32>
    %28 = arith.divf %26, %27 : vector<16x128xf32>
    %29 = vector.extract_strided_slice %22 {offsets = [0, 128], sizes = [16, 128], strides = [1, 1]} : vector<16x384xf32> to vector<16x128xf32>
    %30 = arith.negf %29 : vector<16x128xf32>
    %31 = math.exp %30 : vector<16x128xf32>
    %cst_20 = arith.constant 1.000000e+00 : f32
    %32 = vector.broadcast %cst_20 : f32 to vector<16x128xf32>
    %33 = arith.addf %32, %31 : vector<16x128xf32>
    %34 = arith.divf %32, %33 : vector<16x128xf32>
    %35 = vector.extract_strided_slice %22 {offsets = [0, 256], sizes = [16, 128], strides = [1, 1]} : vector<16x384xf32> to vector<16x128xf32>
    %36 = vector.broadcast %17 : vector<1x128xf32> to vector<16x128xf32>
    %37 = arith.mulf %28, %36 : vector<16x128xf32>
    %38 = arith.addf %35, %37 : vector<16x128xf32>
    %39 = math.tanh %38 : vector<16x128xf32>
    %cst_21 = arith.constant 1.000000e+00 : f32
    %40 = vector.broadcast %cst_21 : f32 to vector<16x128xf32>
    %41 = arith.subf %40, %34 : vector<16x128xf32>
    %42 = arith.mulf %41, %39 : vector<16x128xf32>
    %c16 = arith.constant 16 : index
    %c0_22 = arith.constant 0 : index
    %43 = vector.load %arg12[%c16, %c0_22] : memref<96x384xf32, #tpu.memory_space<vmem>>, vector<16x384xf32>
    %cst_23 = arith.constant dense<0.000000e+00> : vector<16x512xf32>
    %44 = tpu.matmul %42, %16, %cst_23 {dimension_numbers = #tpu.dot_dimension_numbers<[1], [0], [0], [1], [0, 0, 1, 1], [], []>} : vector<16x128xf32>, vector<128x512xf32>, vector<16x512xf32> -> vector<16x512xf32>
    %45 = vector.extract_strided_slice %43 {offsets = [0, 0], sizes = [16, 128], strides = [1, 1]} : vector<16x384xf32> to vector<16x128xf32>
    %46 = vector.extract_strided_slice %44 {offsets = [0, 0], sizes = [16, 128], strides = [1, 1]} : vector<16x512xf32> to vector<16x128xf32>
    %47 = arith.addf %45, %46 : vector<16x128xf32>
    %48 = arith.negf %47 : vector<16x128xf32>
    %49 = math.exp %48 : vector<16x128xf32>
    %cst_24 = arith.constant 1.000000e+00 : f32
    %50 = vector.broadcast %cst_24 : f32 to vector<16x128xf32>
    %51 = arith.addf %50, %49 : vector<16x128xf32>
    %52 = arith.divf %50, %51 : vector<16x128xf32>
    %53 = vector.extract_strided_slice %43 {offsets = [0, 128], sizes = [16, 128], strides = [1, 1]} : vector<16x384xf32> to vector<16x128xf32>
    %54 = vector.extract_strided_slice %44 {offsets = [0, 128], sizes = [16, 128], strides = [1, 1]} : vector<16x512xf32> to vector<16x128xf32>
    %55 = arith.addf %53, %54 : vector<16x128xf32>
    %56 = arith.negf %55 : vector<16x128xf32>
    %57 = math.exp %56 : vector<16x128xf32>
    %cst_25 = arith.constant 1.000000e+00 : f32
    %58 = vector.broadcast %cst_25 : f32 to vector<16x128xf32>
    %59 = arith.addf %58, %57 : vector<16x128xf32>
    %60 = arith.divf %58, %59 : vector<16x128xf32>
    %61 = vector.extract_strided_slice %43 {offsets = [0, 256], sizes = [16, 128], strides = [1, 1]} : vector<16x384xf32> to vector<16x128xf32>
    %62 = vector.extract_strided_slice %44 {offsets = [0, 384], sizes = [16, 128], strides = [1, 1]} : vector<16x512xf32> to vector<16x128xf32>
    %63 = vector.broadcast %18 : vector<1x128xf32> to vector<16x128xf32>
    %64 = arith.mulf %62, %63 : vector<16x128xf32>
    %65 = arith.addf %61, %64 : vector<16x128xf32>
    %66 = vector.extract_strided_slice %44 {offsets = [0, 256], sizes = [16, 128], strides = [1, 1]} : vector<16x512xf32> to vector<16x128xf32>
    %67 = vector.broadcast %17 : vector<1x128xf32> to vector<16x128xf32>
    %68 = arith.addf %66, %67 : vector<16x128xf32>
    %69 = arith.mulf %52, %68 : vector<16x128xf32>
    %70 = arith.addf %65, %69 : vector<16x128xf32>
    %71 = math.tanh %70 : vector<16x128xf32>
    %cst_26 = arith.constant 1.000000e+00 : f32
    %72 = vector.broadcast %cst_26 : f32 to vector<16x128xf32>
    %73 = arith.subf %72, %60 : vector<16x128xf32>
    %74 = arith.mulf %73, %71 : vector<16x128xf32>
    %75 = arith.mulf %60, %42 : vector<16x128xf32>
    %76 = arith.addf %74, %75 : vector<16x128xf32>
    %c32 = arith.constant 32 : index
    %c0_27 = arith.constant 0 : index
    %77 = vector.load %arg12[%c32, %c0_27] : memref<96x384xf32, #tpu.memory_space<vmem>>, vector<16x384xf32>
    %cst_28 = arith.constant dense<0.000000e+00> : vector<16x512xf32>
    %78 = tpu.matmul %76, %16, %cst_28 {dimension_numbers = #tpu.dot_dimension_numbers<[1], [0], [0], [1], [0, 0, 1, 1], [], []>} : vector<16x128xf32>, vector<128x512xf32>, vector<16x512xf32> -> vector<16x512xf32>
    %79 = vector.extract_strided_slice %77 {offsets = [0, 0], sizes = [16, 128], strides = [1, 1]} : vector<16x384xf32> to vector<16x128xf32>
    %80 = vector.extract_strided_slice %78 {offsets = [0, 0], sizes = [16, 128], strides = [1, 1]} : vector<16x512xf32> to vector<16x128xf32>
    %81 = arith.addf %79, %80 : vector<16x128xf32>
    %82 = arith.negf %81 : vector<16x128xf32>
    %83 = math.exp %82 : vector<16x128xf32>
    %cst_29 = arith.constant 1.000000e+00 : f32
    %84 = vector.broadcast %cst_29 : f32 to vector<16x128xf32>
    %85 = arith.addf %84, %83 : vector<16x128xf32>
    %86 = arith.divf %84, %85 : vector<16x128xf32>
    %87 = vector.extract_strided_slice %77 {offsets = [0, 128], sizes = [16, 128], strides = [1, 1]} : vector<16x384xf32> to vector<16x128xf32>
    %88 = vector.extract_strided_slice %78 {offsets = [0, 128], sizes = [16, 128], strides = [1, 1]} : vector<16x512xf32> to vector<16x128xf32>
    %89 = arith.addf %87, %88 : vector<16x128xf32>
    %90 = arith.negf %89 : vector<16x128xf32>
    %91 = math.exp %90 : vector<16x128xf32>
    %cst_30 = arith.constant 1.000000e+00 : f32
    %92 = vector.broadcast %cst_30 : f32 to vector<16x128xf32>
    %93 = arith.addf %92, %91 : vector<16x128xf32>
    %94 = arith.divf %92, %93 : vector<16x128xf32>
    %95 = vector.extract_strided_slice %77 {offsets = [0, 256], sizes = [16, 128], strides = [1, 1]} : vector<16x384xf32> to vector<16x128xf32>
    %96 = vector.extract_strided_slice %78 {offsets = [0, 384], sizes = [16, 128], strides = [1, 1]} : vector<16x512xf32> to vector<16x128xf32>
    %97 = vector.broadcast %18 : vector<1x128xf32> to vector<16x128xf32>
    %98 = arith.mulf %96, %97 : vector<16x128xf32>
    %99 = arith.addf %95, %98 : vector<16x128xf32>
    %100 = vector.extract_strided_slice %78 {offsets = [0, 256], sizes = [16, 128], strides = [1, 1]} : vector<16x512xf32> to vector<16x128xf32>
    %101 = vector.broadcast %17 : vector<1x128xf32> to vector<16x128xf32>
    %102 = arith.addf %100, %101 : vector<16x128xf32>
    %103 = arith.mulf %86, %102 : vector<16x128xf32>
    %104 = arith.addf %99, %103 : vector<16x128xf32>
    %105 = math.tanh %104 : vector<16x128xf32>
    %cst_31 = arith.constant 1.000000e+00 : f32
    %106 = vector.broadcast %cst_31 : f32 to vector<16x128xf32>
    %107 = arith.subf %106, %94 : vector<16x128xf32>
    %108 = arith.mulf %107, %105 : vector<16x128xf32>
    %109 = arith.mulf %94, %76 : vector<16x128xf32>
    %110 = arith.addf %108, %109 : vector<16x128xf32>
    %c48 = arith.constant 48 : index
    %c0_32 = arith.constant 0 : index
    %111 = vector.load %arg12[%c48, %c0_32] : memref<96x384xf32, #tpu.memory_space<vmem>>, vector<16x384xf32>
    %cst_33 = arith.constant dense<0.000000e+00> : vector<16x512xf32>
    %112 = tpu.matmul %110, %16, %cst_33 {dimension_numbers = #tpu.dot_dimension_numbers<[1], [0], [0], [1], [0, 0, 1, 1], [], []>} : vector<16x128xf32>, vector<128x512xf32>, vector<16x512xf32> -> vector<16x512xf32>
    %113 = vector.extract_strided_slice %111 {offsets = [0, 0], sizes = [16, 128], strides = [1, 1]} : vector<16x384xf32> to vector<16x128xf32>
    %114 = vector.extract_strided_slice %112 {offsets = [0, 0], sizes = [16, 128], strides = [1, 1]} : vector<16x512xf32> to vector<16x128xf32>
    %115 = arith.addf %113, %114 : vector<16x128xf32>
    %116 = arith.negf %115 : vector<16x128xf32>
    %117 = math.exp %116 : vector<16x128xf32>
    %cst_34 = arith.constant 1.000000e+00 : f32
    %118 = vector.broadcast %cst_34 : f32 to vector<16x128xf32>
    %119 = arith.addf %118, %117 : vector<16x128xf32>
    %120 = arith.divf %118, %119 : vector<16x128xf32>
    %121 = vector.extract_strided_slice %111 {offsets = [0, 128], sizes = [16, 128], strides = [1, 1]} : vector<16x384xf32> to vector<16x128xf32>
    %122 = vector.extract_strided_slice %112 {offsets = [0, 128], sizes = [16, 128], strides = [1, 1]} : vector<16x512xf32> to vector<16x128xf32>
    %123 = arith.addf %121, %122 : vector<16x128xf32>
    %124 = arith.negf %123 : vector<16x128xf32>
    %125 = math.exp %124 : vector<16x128xf32>
    %cst_35 = arith.constant 1.000000e+00 : f32
    %126 = vector.broadcast %cst_35 : f32 to vector<16x128xf32>
    %127 = arith.addf %126, %125 : vector<16x128xf32>
    %128 = arith.divf %126, %127 : vector<16x128xf32>
    %129 = vector.extract_strided_slice %111 {offsets = [0, 256], sizes = [16, 128], strides = [1, 1]} : vector<16x384xf32> to vector<16x128xf32>
    %130 = vector.extract_strided_slice %112 {offsets = [0, 384], sizes = [16, 128], strides = [1, 1]} : vector<16x512xf32> to vector<16x128xf32>
    %131 = vector.broadcast %18 : vector<1x128xf32> to vector<16x128xf32>
    %132 = arith.mulf %130, %131 : vector<16x128xf32>
    %133 = arith.addf %129, %132 : vector<16x128xf32>
    %134 = vector.extract_strided_slice %112 {offsets = [0, 256], sizes = [16, 128], strides = [1, 1]} : vector<16x512xf32> to vector<16x128xf32>
    %135 = vector.broadcast %17 : vector<1x128xf32> to vector<16x128xf32>
    %136 = arith.addf %134, %135 : vector<16x128xf32>
    %137 = arith.mulf %120, %136 : vector<16x128xf32>
    %138 = arith.addf %133, %137 : vector<16x128xf32>
    %139 = math.tanh %138 : vector<16x128xf32>
    %cst_36 = arith.constant 1.000000e+00 : f32
    %140 = vector.broadcast %cst_36 : f32 to vector<16x128xf32>
    %141 = arith.subf %140, %128 : vector<16x128xf32>
    %142 = arith.mulf %141, %139 : vector<16x128xf32>
    %143 = arith.mulf %128, %110 : vector<16x128xf32>
    %144 = arith.addf %142, %143 : vector<16x128xf32>
    %c64 = arith.constant 64 : index
    %c0_37 = arith.constant 0 : index
    %145 = vector.load %arg12[%c64, %c0_37] : memref<96x384xf32, #tpu.memory_space<vmem>>, vector<16x384xf32>
    %cst_38 = arith.constant dense<0.000000e+00> : vector<16x512xf32>
    %146 = tpu.matmul %144, %16, %cst_38 {dimension_numbers = #tpu.dot_dimension_numbers<[1], [0], [0], [1], [0, 0, 1, 1], [], []>} : vector<16x128xf32>, vector<128x512xf32>, vector<16x512xf32> -> vector<16x512xf32>
    %147 = vector.extract_strided_slice %145 {offsets = [0, 0], sizes = [16, 128], strides = [1, 1]} : vector<16x384xf32> to vector<16x128xf32>
    %148 = vector.extract_strided_slice %146 {offsets = [0, 0], sizes = [16, 128], strides = [1, 1]} : vector<16x512xf32> to vector<16x128xf32>
    %149 = arith.addf %147, %148 : vector<16x128xf32>
    %150 = arith.negf %149 : vector<16x128xf32>
    %151 = math.exp %150 : vector<16x128xf32>
    %cst_39 = arith.constant 1.000000e+00 : f32
    %152 = vector.broadcast %cst_39 : f32 to vector<16x128xf32>
    %153 = arith.addf %152, %151 : vector<16x128xf32>
    %154 = arith.divf %152, %153 : vector<16x128xf32>
    %155 = vector.extract_strided_slice %145 {offsets = [0, 128], sizes = [16, 128], strides = [1, 1]} : vector<16x384xf32> to vector<16x128xf32>
    %156 = vector.extract_strided_slice %146 {offsets = [0, 128], sizes = [16, 128], strides = [1, 1]} : vector<16x512xf32> to vector<16x128xf32>
    %157 = arith.addf %155, %156 : vector<16x128xf32>
    %158 = arith.negf %157 : vector<16x128xf32>
    %159 = math.exp %158 : vector<16x128xf32>
    %cst_40 = arith.constant 1.000000e+00 : f32
    %160 = vector.broadcast %cst_40 : f32 to vector<16x128xf32>
    %161 = arith.addf %160, %159 : vector<16x128xf32>
    %162 = arith.divf %160, %161 : vector<16x128xf32>
    %163 = vector.extract_strided_slice %145 {offsets = [0, 256], sizes = [16, 128], strides = [1, 1]} : vector<16x384xf32> to vector<16x128xf32>
    %164 = vector.extract_strided_slice %146 {offsets = [0, 384], sizes = [16, 128], strides = [1, 1]} : vector<16x512xf32> to vector<16x128xf32>
    %165 = vector.broadcast %18 : vector<1x128xf32> to vector<16x128xf32>
    %166 = arith.mulf %164, %165 : vector<16x128xf32>
    %167 = arith.addf %163, %166 : vector<16x128xf32>
    %168 = vector.extract_strided_slice %146 {offsets = [0, 256], sizes = [16, 128], strides = [1, 1]} : vector<16x512xf32> to vector<16x128xf32>
    %169 = vector.broadcast %17 : vector<1x128xf32> to vector<16x128xf32>
    %170 = arith.addf %168, %169 : vector<16x128xf32>
    %171 = arith.mulf %154, %170 : vector<16x128xf32>
    %172 = arith.addf %167, %171 : vector<16x128xf32>
    %173 = math.tanh %172 : vector<16x128xf32>
    %cst_41 = arith.constant 1.000000e+00 : f32
    %174 = vector.broadcast %cst_41 : f32 to vector<16x128xf32>
    %175 = arith.subf %174, %162 : vector<16x128xf32>
    %176 = arith.mulf %175, %173 : vector<16x128xf32>
    %177 = arith.mulf %162, %144 : vector<16x128xf32>
    %178 = arith.addf %176, %177 : vector<16x128xf32>
    %c80 = arith.constant 80 : index
    %c0_42 = arith.constant 0 : index
    %179 = vector.load %arg12[%c80, %c0_42] : memref<96x384xf32, #tpu.memory_space<vmem>>, vector<16x384xf32>
    %cst_43 = arith.constant dense<0.000000e+00> : vector<16x512xf32>
    %180 = tpu.matmul %178, %16, %cst_43 {dimension_numbers = #tpu.dot_dimension_numbers<[1], [0], [0], [1], [0, 0, 1, 1], [], []>} : vector<16x128xf32>, vector<128x512xf32>, vector<16x512xf32> -> vector<16x512xf32>
    %181 = vector.extract_strided_slice %179 {offsets = [0, 0], sizes = [16, 128], strides = [1, 1]} : vector<16x384xf32> to vector<16x128xf32>
    %182 = vector.extract_strided_slice %180 {offsets = [0, 0], sizes = [16, 128], strides = [1, 1]} : vector<16x512xf32> to vector<16x128xf32>
    %183 = arith.addf %181, %182 : vector<16x128xf32>
    %184 = arith.negf %183 : vector<16x128xf32>
    %185 = math.exp %184 : vector<16x128xf32>
    %cst_44 = arith.constant 1.000000e+00 : f32
    %186 = vector.broadcast %cst_44 : f32 to vector<16x128xf32>
    %187 = arith.addf %186, %185 : vector<16x128xf32>
    %188 = arith.divf %186, %187 : vector<16x128xf32>
    %189 = vector.extract_strided_slice %179 {offsets = [0, 128], sizes = [16, 128], strides = [1, 1]} : vector<16x384xf32> to vector<16x128xf32>
    %190 = vector.extract_strided_slice %180 {offsets = [0, 128], sizes = [16, 128], strides = [1, 1]} : vector<16x512xf32> to vector<16x128xf32>
    %191 = arith.addf %189, %190 : vector<16x128xf32>
    %192 = arith.negf %191 : vector<16x128xf32>
    %193 = math.exp %192 : vector<16x128xf32>
    %cst_45 = arith.constant 1.000000e+00 : f32
    %194 = vector.broadcast %cst_45 : f32 to vector<16x128xf32>
    %195 = arith.addf %194, %193 : vector<16x128xf32>
    %196 = arith.divf %194, %195 : vector<16x128xf32>
    %197 = vector.extract_strided_slice %179 {offsets = [0, 256], sizes = [16, 128], strides = [1, 1]} : vector<16x384xf32> to vector<16x128xf32>
    %198 = vector.extract_strided_slice %180 {offsets = [0, 384], sizes = [16, 128], strides = [1, 1]} : vector<16x512xf32> to vector<16x128xf32>
    %199 = vector.broadcast %18 : vector<1x128xf32> to vector<16x128xf32>
    %200 = arith.mulf %198, %199 : vector<16x128xf32>
    %201 = arith.addf %197, %200 : vector<16x128xf32>
    %202 = vector.extract_strided_slice %180 {offsets = [0, 256], sizes = [16, 128], strides = [1, 1]} : vector<16x512xf32> to vector<16x128xf32>
    %203 = vector.broadcast %17 : vector<1x128xf32> to vector<16x128xf32>
    %204 = arith.addf %202, %203 : vector<16x128xf32>
    %205 = arith.mulf %188, %204 : vector<16x128xf32>
    %206 = arith.addf %201, %205 : vector<16x128xf32>
    %207 = math.tanh %206 : vector<16x128xf32>
    %cst_46 = arith.constant 1.000000e+00 : f32
    %208 = vector.broadcast %cst_46 : f32 to vector<16x128xf32>
    %209 = arith.subf %208, %196 : vector<16x128xf32>
    %210 = arith.mulf %209, %207 : vector<16x128xf32>
    %211 = arith.mulf %196, %178 : vector<16x128xf32>
    %212 = arith.addf %210, %211 : vector<16x128xf32>
    %c0_47 = arith.constant 0 : index
    %c0_48 = arith.constant 0 : index
    %213 = vector.load %arg10[%c0_47, %c0_48] : memref<16x128xf32, #tpu.memory_space<vmem>>, vector<16x128xf32>
    tpu.vector_store %arg10[%c0_47, %c0_48], %212 {strides = array<i32>} : memref<16x128xf32, #tpu.memory_space<vmem>>, vector<16x128xf32>,
    %c0_49 = arith.constant 0 : index
    %c0_50 = arith.constant 0 : index
    %214 = vector.load %arg8[%c0_49, %c0_50] : memref<1x128xf32, #tpu.memory_space<vmem>>, vector<1x128xf32>
    %215 = vector.broadcast %214 : vector<1x128xf32> to vector<16x128xf32>
    %216 = arith.mulf %212, %215 : vector<16x128xf32>
    %cst_51 = arith.constant dense<0.000000e+00> : vector<16xf32>
    %217 = vector.multi_reduction <add>, %216, %cst_51 [1] : vector<16x128xf32> to vector<16xf32>
    %218 = vector.shape_cast %217 : vector<16xf32> to vector<16x1xf32>
    %c0_52 = arith.constant 0 : index
    %c0_53 = arith.constant 0 : index
    %219 = vector.load %arg9[%c0_52, %c0_53] : memref<1x1xf32, #tpu.memory_space<vmem>>, vector<1x1xf32>
    %220 = vector.broadcast %219 : vector<1x1xf32> to vector<16x1xf32>
    %221 = arith.addf %218, %220 : vector<16x1xf32>
    %c0_54 = arith.constant 0 : index
    %c0_55 = arith.constant 0 : index
    %222 = vector.load %arg11[%c0_54, %c0_55] : memref<16x1xf32, #tpu.memory_space<vmem>>, vector<16x1xf32>
    tpu.vector_store %arg11[%c0_54, %c0_55], %221 {strides = array<i32>} : memref<16x1xf32, #tpu.memory_space<vmem>>, vector<16x1xf32>,
    return
  }
}

</mosaic_0001>

<llo_original>
// kernel: encoder_forward.1
$region0: #{encoder_forward.1}
  #allocation0 [shape = 'u32[]', space=smem, size = 0x4, offset = 0x4, fixed_abs, tag = 'smem constant byte address 0x4 - core index']
  #allocation1 [shape = 'u32[72,128]{1,0:T(1,128)}', space=vmem, size = 0x9000, scoped, tag = 'internal scratch']
  #allocation2 [shape = 'f32[96,384]{1,0:T(8,128)}', space=vmem, size = 0x24000, scoped, tag = 'scratch operand']
  #allocation3 [shape = 'f32[1,1]{1,0:T(1,128)S(1)}', space=vmem, size = 0x200, scoped, tag = 'scoped memory for encoder_forward.1']
  %s0 = inlined_call_operand.vmem [shape: f32[96,14], index: 0, kind: input, shape index: {}]
  %s1 = inlined_call_operand.vmem [shape: s32[96,1], index: 1, kind: input, shape index: {}]
  %s2 = inlined_call_operand.vmem [shape: f32[14,384], index: 2, kind: input, shape index: {}]
  %s3 = inlined_call_operand.vmem [shape: f32[1,384], index: 3, kind: input, shape index: {}]
  %s4 = inlined_call_operand.vmem [shape: f32[1,384], index: 4, kind: input, shape index: {}]
  %s5 = inlined_call_operand.vmem [shape: f32[128,512], index: 5, kind: input, shape index: {}]
  %s6 = inlined_call_operand.vmem [shape: f32[1,128], index: 6, kind: input, shape index: {}]
  %s7 = inlined_call_operand.vmem [shape: f32[1,128], index: 7, kind: input, shape index: {}]
  %s8 = inlined_call_operand.vmem [shape: f32[1,128], index: 8, kind: input, shape index: {}]
  %s9 = inlined_call_operand.<no memory space> [shape: f32[1,1], index: 9, kind: input, shape index: {}]
  %s10 = inlined_call_operand.hbm [shape: f32[16,128], index: 10, kind: output, shape index: {0}]
  %s11 = inlined_call_operand.vmem [shape: f32[16,1], index: 11, kind: output, shape index: {1}]
  %12 = xla_tuple %s10, %s11
  %s13 = sld [smem:[#allocation0]]
  $region58: #{encoder_forward.1} parent=0
    _
  %s15 = ssub.s32 1, %s13
  %s16 = scalar_select 0, %s15, %s13
  %v17 = vstv %s9
  %18 = vst [vmem:[#allocation3] sm:$0x1] %v17
  $region1: #{encoder_forward.1} parent=0
    #allocation4 [shape = 'u8[8192]{0}', space=vmem, size = 0x2000, scoped, tag = 'output window, operand 0, single buffered']
    #allocation5 [shape = 's32[1]{0}', space=sflag, size = 0x4, scoped, tag = 'scoped memory for encoder_forward.1']
    %19 = vsyncpa [#allocation5], 0
    // Predicated region
    $region2: #{encoder_forward.1} parent=1 // pred_check
      _
    $region3: #{encoder_forward.1} parent=1 // pred_check_branch
      %21 = sbr.rel (0) target = $region5
    $region4: #{encoder_forward.1} parent=1 // pred_region
      _
    $region5: #{encoder_forward.1} parent=1 // pred_fallthru
      _
    // Predicated region
    $region6: #{encoder_forward.1} parent=1 // pred_check
      _
    $region7: #{encoder_forward.1} parent=1 // pred_check_branch
      %23 = sbr.rel (0) target = $region9
    $region8: #{encoder_forward.1} parent=1 // pred_region
      _
    $region9: #{encoder_forward.1} parent=1 // pred_fallthru
      _
    // Predicated region
    $region10: #{encoder_forward.1} parent=1 // pred_check
      _
    $region11: #{encoder_forward.1} parent=1 // pred_check_branch
      %25 = sbr.rel (0) target = $region13
    $region12: #{encoder_forward.1} parent=1 // pred_region
      _
    $region13: #{encoder_forward.1} parent=1 // pred_fallthru
      _
    // Predicated region
    $region14: #{encoder_forward.1} parent=1 // pred_check
      _
    $region15: #{encoder_forward.1} parent=1 // pred_check_branch
      %27 = sbr.rel (0) target = $region17
    $region16: #{encoder_forward.1} parent=1 // pred_region
      _
    $region17: #{encoder_forward.1} parent=1 // pred_fallthru
      _
    // Predicated region
    $region18: #{encoder_forward.1} parent=1 // pred_check
      _
    $region19: #{encoder_forward.1} parent=1 // pred_check_branch
      %29 = sbr.rel (0) target = $region21
    $region20: #{encoder_forward.1} parent=1 // pred_region
      _
    $region21: #{encoder_forward.1} parent=1 // pred_fallthru
      _
    // Predicated region
    $region22: #{encoder_forward.1} parent=1 // pred_check
      _
    $region23: #{encoder_forward.1} parent=1 // pred_check_branch
      %31 = sbr.rel (0) target = $region25
    $region24: #{encoder_forward.1} parent=1 // pred_region
      _
    $region25: #{encoder_forward.1} parent=1 // pred_fallthru
      _
    // Predicated region
    $region26: #{encoder_forward.1} parent=1 // pred_check
      _
    $region27: #{encoder_forward.1} parent=1 // pred_check_branch
      %33 = sbr.rel (0) target = $region29
    $region28: #{encoder_forward.1} parent=1 // pred_region
      _
    $region29: #{encoder_forward.1} parent=1 // pred_fallthru
      _
    // Predicated region
    $region30: #{encoder_forward.1} parent=1 // pred_check
      _
    $region31: #{encoder_forward.1} parent=1 // pred_check_branch
      %35 = sbr.rel (0) target = $region33
    $region32: #{encoder_forward.1} parent=1 // pred_region
      _
    $region33: #{encoder_forward.1} parent=1 // pred_fallthru
      _
    // Predicated region
    $region34: #{encoder_forward.1} parent=1 // pred_check
      _
    $region35: #{encoder_forward.1} parent=1 // pred_check_branch
      %37 = sbr.rel (0) target = $region37
    $region36: #{encoder_forward.1} parent=1 // pred_region
      _
    $region37: #{encoder_forward.1} parent=1 // pred_fallthru
      _
    // Predicated region
    $region38: #{encoder_forward.1} parent=1 // pred_check
      _
    $region39: #{encoder_forward.1} parent=1 // pred_check_branch
      %39 = sbr.rel (0) target = $region41
    $region40: #{encoder_forward.1} parent=1 // pred_region
      _
    $region41: #{encoder_forward.1} parent=1 // pred_fallthru
      _
    %v40 = vlaneseq
    %v41 = vand.u32 %v40, 127
    %v42 = vld [vmem:[%s0] sm:$0xff]
    %v43 = vld [vmem:[%s0 + $0x8] sm:$0xff]
    %v44 = vld [vmem:[%s0 + $0x10] sm:$0xff]
    %v45 = vld [vmem:[%s0 + $0x18] sm:$0xff]
    %v46 = vld [vmem:[%s0 + $0x20] sm:$0xff]
    %v47 = vld [vmem:[%s0 + $0x28] sm:$0xff]
    %v48 = vld [vmem:[%s0 + $0x30] sm:$0xff]
    %v49 = vld [vmem:[%s0 + $0x38] sm:$0xff]
    %v50 = vld [vmem:[%s0 + $0x40] sm:$0xff]
    %v51 = vld [vmem:[%s0 + $0x48] sm:$0xff]
    %v52 = vld [vmem:[%s0 + $0x50] sm:$0xff]
    %v53 = vld [vmem:[%s0 + $0x58] sm:$0xff]
    %v54 = vld [vmem:[%s1] sm:$0xff]
    %v55 = vld [vmem:[%s1 + $0x8] sm:$0xff]
    %v56 = vld [vmem:[%s1 + $0x10] sm:$0xff]
    %v57 = vld [vmem:[%s1 + $0x18] sm:$0xff]
    %v58 = vld [vmem:[%s1 + $0x20] sm:$0xff]
    %v59 = vld [vmem:[%s1 + $0x28] sm:$0xff]
    %v60 = vld [vmem:[%s1 + $0x30] sm:$0xff]
    %v61 = vld [vmem:[%s1 + $0x38] sm:$0xff]
    %v62 = vld [vmem:[%s1 + $0x40] sm:$0xff]
    %v63 = vld [vmem:[%s1 + $0x48] sm:$0xff]
    %v64 = vld [vmem:[%s1 + $0x50] sm:$0xff]
    %v65 = vld [vmem:[%s1 + $0x58] sm:$0xff]
    %v66 = vadd.s32 %v54, 4
    %v67 = vadd.s32 %v55, 4
    %v68 = vadd.s32 %v56, 4
    %v69 = vadd.s32 %v57, 4
    %v70 = vadd.s32 %v58, 4
    %v71 = vadd.s32 %v59, 4
    %v72 = vadd.s32 %v60, 4
    %v73 = vadd.s32 %v61, 4
    %v74 = vadd.s32 %v62, 4
    %v75 = vadd.s32 %v63, 4
    %v76 = vadd.s32 %v64, 4
    %v77 = vadd.s32 %v65, 4
    %78 = vset.pattern.permute.xlu0 0
    %79 = vperm.xlu0 %78, %v66
    %v80 = vpop.permute.xlu0 %79
    %81 = vset.pattern.permute.xlu0 0
    %82 = vperm.xlu0 %81, %v67
    %v83 = vpop.permute.xlu0 %82
    %84 = vset.pattern.permute.xlu0 0
    %85 = vperm.xlu0 %84, %v68
    %v86 = vpop.permute.xlu0 %85
    %87 = vset.pattern.permute.xlu0 0
    %88 = vperm.xlu0 %87, %v69
    %v89 = vpop.permute.xlu0 %88
    %90 = vset.pattern.permute.xlu0 0
    %91 = vperm.xlu0 %90, %v70
    %v92 = vpop.permute.xlu0 %91
    %93 = vset.pattern.permute.xlu0 0
    %94 = vperm.xlu0 %93, %v71
    %v95 = vpop.permute.xlu0 %94
    %96 = vset.pattern.permute.xlu0 0
    %97 = vperm.xlu0 %96, %v72
    %v98 = vpop.permute.xlu0 %97
    %99 = vset.pattern.permute.xlu0 0
    %100 = vperm.xlu0 %99, %v73
    %v101 = vpop.permute.xlu0 %100
    %102 = vset.pattern.permute.xlu0 0
    %103 = vperm.xlu0 %102, %v74
    %v104 = vpop.permute.xlu0 %103
    %105 = vset.pattern.permute.xlu0 0
    %106 = vperm.xlu0 %105, %v75
    %v107 = vpop.permute.xlu0 %106
    %108 = vset.pattern.permute.xlu0 0
    %109 = vperm.xlu0 %108, %v76
    %v110 = vpop.permute.xlu0 %109
    %111 = vset.pattern.permute.xlu0 0
    %112 = vperm.xlu0 %111, %v77
    %v113 = vpop.permute.xlu0 %112
    %vm114 = vcmp.eq.s32.totalorder %v41, %v80
    %vm115 = vcmp.eq.s32.totalorder %v41, %v83
    %vm116 = vcmp.eq.s32.totalorder %v41, %v86
    %vm117 = vcmp.eq.s32.totalorder %v41, %v89
    %vm118 = vcmp.eq.s32.totalorder %v41, %v92
    %vm119 = vcmp.eq.s32.totalorder %v41, %v95
    %vm120 = vcmp.eq.s32.totalorder %v41, %v98
    %vm121 = vcmp.eq.s32.totalorder %v41, %v101
    %vm122 = vcmp.eq.s32.totalorder %v41, %v104
    %vm123 = vcmp.eq.s32.totalorder %v41, %v107
    %vm124 = vcmp.eq.s32.totalorder %v41, %v110
    %vm125 = vcmp.eq.s32.totalorder %v41, %v113
    %v126 = vsel %vm114, 1, 0
    %v127 = vsel %vm115, 1, 0
    %v128 = vsel %vm116, 1, 0
    %v129 = vsel %vm117, 1, 0
    %v130 = vsel %vm118, 1, 0
    %v131 = vsel %vm119, 1, 0
    %v132 = vsel %vm120, 1, 0
    %v133 = vsel %vm121, 1, 0
    %v134 = vsel %vm122, 1, 0
    %v135 = vsel %vm123, 1, 0
    %v136 = vsel %vm124, 1, 0
    %v137 = vsel %vm125, 1, 0
    %v138 = vcvt.s32.f32 %v126
    %v139 = vcvt.s32.f32 %v127
    %v140 = vcvt.s32.f32 %v128
    %v141 = vcvt.s32.f32 %v129
    %v142 = vcvt.s32.f32 %v130
    %v143 = vcvt.s32.f32 %v131
    %v144 = vcvt.s32.f32 %v132
    %v145 = vcvt.s32.f32 %v133
    %v146 = vcvt.s32.f32 %v134
    %v147 = vcvt.s32.f32 %v135
    %v148 = vcvt.s32.f32 %v136
    %v149 = vcvt.s32.f32 %v137
    %v150 = vadd.f32 %v42, %v138
    %v151 = vadd.f32 %v43, %v139
    %v152 = vadd.f32 %v44, %v140
    %v153 = vadd.f32 %v45, %v141
    %v154 = vadd.f32 %v46, %v142
    %v155 = vadd.f32 %v47, %v143
    %v156 = vadd.f32 %v48, %v144
    %v157 = vadd.f32 %v49, %v145
    %v158 = vadd.f32 %v50, %v146
    %v159 = vadd.f32 %v51, %v147
    %v160 = vadd.f32 %v52, %v148
    %v161 = vadd.f32 %v53, %v149
    %v162 = vld [vmem:[%s2] sm:$0xff]
    %v163 = vld [vmem:[%s2 + $0x8] sm:$0xff]
    %v164 = vld [vmem:[%s2 + $0x10] sm:$0xff]
    %v165 = vld [vmem:[%s2 + $0x18] sm:$0x3f]
    %v166 = vld [vmem:[%s2 + $0x20] sm:$0x3f]
    %v167 = vld [vmem:[%s2 + $0x28] sm:$0x3f]
    %v168 = vld [vmem:[%s3] sm:$0x7]
    %v170 = vperm.slane %v168, 0
    %v171 = vperm.slane %v168, 1
    %v172 = vperm.slane %v168, 2
    %vm176 = vcmask 113664
    %v178 = vsel %vm176, %v150, 0
    %v181 = vsel %vm176, %v151, 0
    %v184 = vsel %vm176, %v152, 0
    %v187 = vsel %vm176, %v153, 0
    %v190 = vsel %vm176, %v154, 0
    %v193 = vsel %vm176, %v155, 0
    %v196 = vsel %vm176, %v156, 0
    %v199 = vsel %vm176, %v157, 0
    %v202 = vsel %vm176, %v158, 0
    %v205 = vsel %vm176, %v159, 0
    %v208 = vsel %vm176, %v160, 0
    %v211 = vsel %vm176, %v161, 0
    %vm213 = vcmask 1045504
    %v215 = vsel %vm213, %v165, 0
    %v218 = vsel %vm213, %v166, 0
    %v221 = vsel %vm213, %v167, 0
    %223 = vmatpush.msra.mxu0 0.0
    %224 = vmatpush.msra.mxu0 0.0
    %225 = vmatpush.msra.mxu0 0.0
    %226 = vmatpush.msra.mxu0 0.0
    %227 = vmatpush.msra.mxu0 0.0
    %228 = vmatpush.msra.mxu0 0.0
    %229 = vmatpush.msra.mxu0 0.0
    %230 = vmatpush.msra.mxu0 0.0
    %231 = vmatpush.msra.mxu0 0.0
    %232 = vmatpush.msra.mxu0 0.0
    %233 = vmatpush.msra.mxu0 0.0
    %234 = vmatpush.msra.mxu0 0.0
    %235 = vmatpush.msra.mxu0 0.0
    %236 = vmatpush.msra.mxu0 0.0
    %237 = vmatpush.msra.mxu0 %v215
    %238 = vmatpush.msra.mxu0 %v162
    %239 = vmatmul.f32.gmra.mxu0 %v178
    %v240 = vpop.f32.mrf.mxu0
    %v241 = vadd.f32 %v170, %v240
    %242 = vmatmul.f32.gmra.mxu0 %v181
    %v243 = vpop.f32.mrf.mxu0
    %v244 = vadd.f32 %v170, %v243
    %245 = vmatmul.f32.gmra.mxu0 %v184
    %v246 = vpop.f32.mrf.mxu0
    %v247 = vadd.f32 %v170, %v246
    %248 = vmatmul.f32.gmra.mxu0 %v187
    %v249 = vpop.f32.mrf.mxu0
    %v250 = vadd.f32 %v170, %v249
    %251 = vmatmul.f32.gmra.mxu0 %v190
    %v252 = vpop.f32.mrf.mxu0
    %v253 = vadd.f32 %v170, %v252
    %254 = vmatmul.f32.gmra.mxu0 %v193
    %v255 = vpop.f32.mrf.mxu0
    %v256 = vadd.f32 %v170, %v255
    %257 = vmatmul.f32.gmra.mxu0 %v196
    %v258 = vpop.f32.mrf.mxu0
    %v259 = vadd.f32 %v170, %v258
    %260 = vmatmul.f32.gmra.mxu0 %v199
    %v261 = vpop.f32.mrf.mxu0
    %v262 = vadd.f32 %v170, %v261
    %263 = vmatmul.f32.gmra.mxu0 %v202
    %v264 = vpop.f32.mrf.mxu0
    %v265 = vadd.f32 %v170, %v264
    %266 = vmatmul.f32.gmra.mxu0 %v205
    %v267 = vpop.f32.mrf.mxu0
    %v268 = vadd.f32 %v170, %v267
    %269 = vmatmul.f32.gmra.mxu0 %v208
    %v270 = vpop.f32.mrf.mxu0
    %v271 = vadd.f32 %v170, %v270
    %272 = vmatmul.f32.gmra.mxu0 %v211
    %v273 = vpop.f32.mrf.mxu0
    %v274 = vadd.f32 %v170, %v273
    %275 = vdwg.mxu0
    %276 = vmatpush.msra.mxu0 0.0
    %277 = vmatpush.msra.mxu0 0.0
    %278 = vmatpush.msra.mxu0 0.0
    %279 = vmatpush.msra.mxu0 0.0
    %280 = vmatpush.msra.mxu0 0.0
    %281 = vmatpush.msra.mxu0 0.0
    %282 = vmatpush.msra.mxu0 0.0
    %283 = vmatpush.msra.mxu0 0.0
    %284 = vmatpush.msra.mxu0 0.0
    %285 = vmatpush.msra.mxu0 0.0
    %286 = vmatpush.msra.mxu0 0.0
    %287 = vmatpush.msra.mxu0 0.0
    %288 = vmatpush.msra.mxu0 0.0
    %289 = vmatpush.msra.mxu0 0.0
    %290 = vmatpush.msra.mxu0 %v218
    %291 = vmatpush.msra.mxu0 %v163
    %292 = vmatmul.f32.gmra.mxu0 %v178
    %v293 = vpop.f32.mrf.mxu0
    %v294 = vadd.f32 %v171, %v293
    %295 = vmatmul.f32.gmra.mxu0 %v181
    %v296 = vpop.f32.mrf.mxu0
    %v297 = vadd.f32 %v171, %v296
    %298 = vmatmul.f32.gmra.mxu0 %v184
    %v299 = vpop.f32.mrf.mxu0
    %v300 = vadd.f32 %v171, %v299
    %301 = vmatmul.f32.gmra.mxu0 %v187
    %v302 = vpop.f32.mrf.mxu0
    %v303 = vadd.f32 %v171, %v302
    %304 = vmatmul.f32.gmra.mxu0 %v190
    %v305 = vpop.f32.mrf.mxu0
    %v306 = vadd.f32 %v171, %v305
    %307 = vmatmul.f32.gmra.mxu0 %v193
    %v308 = vpop.f32.mrf.mxu0
    %v309 = vadd.f32 %v171, %v308
    %310 = vmatmul.f32.gmra.mxu0 %v196
    %v311 = vpop.f32.mrf.mxu0
    %v312 = vadd.f32 %v171, %v311
    %313 = vmatmul.f32.gmra.mxu0 %v199
    %v314 = vpop.f32.mrf.mxu0
    %v315 = vadd.f32 %v171, %v314
    %316 = vmatmul.f32.gmra.mxu0 %v202
    %v317 = vpop.f32.mrf.mxu0
    %v318 = vadd.f32 %v171, %v317
    %319 = vmatmul.f32.gmra.mxu0 %v205
    %v320 = vpop.f32.mrf.mxu0
    %v321 = vadd.f32 %v171, %v320
    %322 = vmatmul.f32.gmra.mxu0 %v208
    %v323 = vpop.f32.mrf.mxu0
    %v324 = vadd.f32 %v171, %v323
    %325 = vmatmul.f32.gmra.mxu0 %v211
    %v326 = vpop.f32.mrf.mxu0
    %v327 = vadd.f32 %v171, %v326
    %328 = vdwg.mxu0
    %329 = vmatpush.msra.mxu0 0.0
    %330 = vmatpush.msra.mxu0 0.0
    %331 = vmatpush.msra.mxu0 0.0
    %332 = vmatpush.msra.mxu0 0.0
    %333 = vmatpush.msra.mxu0 0.0
    %334 = vmatpush.msra.mxu0 0.0
    %335 = vmatpush.msra.mxu0 0.0
    %336 = vmatpush.msra.mxu0 0.0
    %337 = vmatpush.msra.mxu0 0.0
    %338 = vmatpush.msra.mxu0 0.0
    %339 = vmatpush.msra.mxu0 0.0
    %340 = vmatpush.msra.mxu0 0.0
    %341 = vmatpush.msra.mxu0 0.0
    %342 = vmatpush.msra.mxu0 0.0
    %343 = vmatpush.msra.mxu0 %v221
    %344 = vmatpush.msra.mxu0 %v164
    %345 = vmatmul.f32.gmra.mxu0 %v178
    %v346 = vpop.f32.mrf.mxu0
    %v347 = vadd.f32 %v172, %v346
    %348 = vmatmul.f32.gmra.mxu0 %v181
    %v349 = vpop.f32.mrf.mxu0
    %v350 = vadd.f32 %v172, %v349
    %351 = vmatmul.f32.gmra.mxu0 %v184
    %v352 = vpop.f32.mrf.mxu0
    %v353 = vadd.f32 %v172, %v352
    %354 = vmatmul.f32.gmra.mxu0 %v187
    %v355 = vpop.f32.mrf.mxu0
    %v356 = vadd.f32 %v172, %v355
    %357 = vmatmul.f32.gmra.mxu0 %v190
    %v358 = vpop.f32.mrf.mxu0
    %v359 = vadd.f32 %v172, %v358
    %360 = vmatmul.f32.gmra.mxu0 %v193
    %v361 = vpop.f32.mrf.mxu0
    %v362 = vadd.f32 %v172, %v361
    %363 = vmatmul.f32.gmra.mxu0 %v196
    %v364 = vpop.f32.mrf.mxu0
    %v365 = vadd.f32 %v172, %v364
    %366 = vmatmul.f32.gmra.mxu0 %v199
    %v367 = vpop.f32.mrf.mxu0
    %v368 = vadd.f32 %v172, %v367
    %369 = vmatmul.f32.gmra.mxu0 %v202
    %v370 = vpop.f32.mrf.mxu0
    %v371 = vadd.f32 %v172, %v370
    %372 = vmatmul.f32.gmra.mxu0 %v205
    %v373 = vpop.f32.mrf.mxu0
    %v374 = vadd.f32 %v172, %v373
    %375 = vmatmul.f32.gmra.mxu0 %v208
    %v376 = vpop.f32.mrf.mxu0
    %v377 = vadd.f32 %v172, %v376
    %378 = vmatmul.f32.gmra.mxu0 %v211
    %v379 = vpop.f32.mrf.mxu0
    %v380 = vadd.f32 %v172, %v379
    %381 = vdwg.mxu0
    %382 = vst [vmem:[#allocation2] sm:$0xff] %v241
    %383 = vst [vmem:[#allocation2 + $0x8] sm:$0xff] %v294
    %384 = vst [vmem:[#allocation2 + $0x10] sm:$0xff] %v347
    %385 = vst [vmem:[#allocation2 + $0x18] sm:$0xff] %v244
    %386 = vst [vmem:[#allocation2 + $0x20] sm:$0xff] %v297
    %387 = vst [vmem:[#allocation2 + $0x28] sm:$0xff] %v350
    %388 = vst [vmem:[#allocation2 + $0x30] sm:$0xff] %v247
    %389 = vst [vmem:[#allocation2 + $0x38] sm:$0xff] %v300
    %390 = vst [vmem:[#allocation2 + $0x40] sm:$0xff] %v353
    %391 = vst [vmem:[#allocation2 + $0x48] sm:$0xff] %v250
    %392 = vst [vmem:[#allocation2 + $0x50] sm:$0xff] %v303
    %393 = vst [vmem:[#allocation2 + $0x58] sm:$0xff] %v356
    %394 = vst [vmem:[#allocation2 + $0x60] sm:$0xff] %v253
    %395 = vst [vmem:[#allocation2 + $0x68] sm:$0xff] %v306
    %396 = vst [vmem:[#allocation2 + $0x70] sm:$0xff] %v359
    %397 = vst [vmem:[#allocation2 + $0x78] sm:$0xff] %v256
    %398 = vst [vmem:[#allocation2 + $0x80] sm:$0xff] %v309
    %399 = vst [vmem:[#allocation2 + $0x88] sm:$0xff] %v362
    %400 = vst [vmem:[#allocation2 + $0x90] sm:$0xff] %v259
    %401 = vst [vmem:[#allocation2 + $0x98] sm:$0xff] %v312
    %402 = vst [vmem:[#allocation2 + $0xa0] sm:$0xff] %v365
    %403 = vst [vmem:[#allocation2 + $0xa8] sm:$0xff] %v262
    %404 = vst [vmem:[#allocation2 + $0xb0] sm:$0xff] %v315
    %405 = vst [vmem:[#allocation2 + $0xb8] sm:$0xff] %v368
    %406 = vst [vmem:[#allocation2 + $0xc0] sm:$0xff] %v265
    %407 = vst [vmem:[#allocation2 + $0xc8] sm:$0xff] %v318
    %408 = vst [vmem:[#allocation2 + $0xd0] sm:$0xff] %v371
    %409 = vst [vmem:[#allocation2 + $0xd8] sm:$0xff] %v268
    %410 = vst [vmem:[#allocation2 + $0xe0] sm:$0xff] %v321
    %411 = vst [vmem:[#allocation2 + $0xe8] sm:$0xff] %v374
    %412 = vst [vmem:[#allocation2 + $0xf0] sm:$0xff] %v271
    %413 = vst [vmem:[#allocation2 + $0xf8] sm:$0xff] %v324
    %414 = vst [vmem:[#allocation2 + $0x100] sm:$0xff] %v377
    %415 = vst [vmem:[#allocation2 + $0x108] sm:$0xff] %v274
    %416 = vst [vmem:[#allocation2 + $0x110] sm:$0xff] %v327
    %417 = vst [vmem:[#allocation2 + $0x118] sm:$0xff] %v380
    %v418 = vld [vmem:[%s5] sm:$0xff]
    %v419 = vld [vmem:[%s5 + $0x8] sm:$0xff]
    %v420 = vld [vmem:[%s5 + $0x10] sm:$0xff]
    %v421 = vld [vmem:[%s5 + $0x18] sm:$0xff]
    %v422 = vld [vmem:[%s5 + $0x20] sm:$0xff]
    %v423 = vld [vmem:[%s5 + $0x28] sm:$0xff]
    %v424 = vld [vmem:[%s5 + $0x30] sm:$0xff]
    %v425 = vld [vmem:[%s5 + $0x38] sm:$0xff]
    %v426 = vld [vmem:[%s5 + $0x40] sm:$0xff]
    %v427 = vld [vmem:[%s5 + $0x48] sm:$0xff]
    %v428 = vld [vmem:[%s5 + $0x50] sm:$0xff]
    %v429 = vld [vmem:[%s5 + $0x58] sm:$0xff]
    %v430 = vld [vmem:[%s5 + $0x60] sm:$0xff]
    %v431 = vld [vmem:[%s5 + $0x68] sm:$0xff]
    %v432 = vld [vmem:[%s5 + $0x70] sm:$0xff]
    %v433 = vld [vmem:[%s5 + $0x78] sm:$0xff]
    %v434 = vld [vmem:[%s5 + $0x80] sm:$0xff]
    %v435 = vld [vmem:[%s5 + $0x88] sm:$0xff]
    %v436 = vld [vmem:[%s5 + $0x90] sm:$0xff]
    %v437 = vld [vmem:[%s5 + $0x98] sm:$0xff]
    %v438 = vld [vmem:[%s5 + $0xa0] sm:$0xff]
    %v439 = vld [vmem:[%s5 + $0xa8] sm:$0xff]
    %v440 = vld [vmem:[%s5 + $0xb0] sm:$0xff]
    %v441 = vld [vmem:[%s5 + $0xb8] sm:$0xff]
    %v442 = vld [vmem:[%s5 + $0xc0] sm:$0xff]
    %v443 = vld [vmem:[%s5 + $0xc8] sm:$0xff]
    %v444 = vld [vmem:[%s5 + $0xd0] sm:$0xff]
    %v445 = vld [vmem:[%s5 + $0xd8] sm:$0xff]
    %v446 = vld [vmem:[%s5 + $0xe0] sm:$0xff]
    %v447 = vld [vmem:[%s5 + $0xe8] sm:$0xff]
    %v448 = vld [vmem:[%s5 + $0xf0] sm:$0xff]
    %v449 = vld [vmem:[%s5 + $0xf8] sm:$0xff]
    %v450 = vld [vmem:[%s5 + $0x100] sm:$0xff]
    %v451 = vld [vmem:[%s5 + $0x108] sm:$0xff]
    %v452 = vld [vmem:[%s5 + $0x110] sm:$0xff]
    %v453 = vld [vmem:[%s5 + $0x118] sm:$0xff]
    %v454 = vld [vmem:[%s5 + $0x120] sm:$0xff]
    %v455 = vld [vmem:[%s5 + $0x128] sm:$0xff]
    %v456 = vld [vmem:[%s5 + $0x130] sm:$0xff]
    %v457 = vld [vmem:[%s5 + $0x138] sm:$0xff]
    %v458 = vld [vmem:[%s5 + $0x140] sm:$0xff]
    %v459 = vld [vmem:[%s5 + $0x148] sm:$0xff]
    %v460 = vld [vmem:[%s5 + $0x150] sm:$0xff]
    %v461 = vld [vmem:[%s5 + $0x158] sm:$0xff]
    %v462 = vld [vmem:[%s5 + $0x160] sm:$0xff]
    %v463 = vld [vmem:[%s5 + $0x168] sm:$0xff]
    %v464 = vld [vmem:[%s5 + $0x170] sm:$0xff]
    %v465 = vld [vmem:[%s5 + $0x178] sm:$0xff]
    %v466 = vld [vmem:[%s5 + $0x180] sm:$0xff]
    %v467 = vld [vmem:[%s5 + $0x188] sm:$0xff]
    %v468 = vld [vmem:[%s5 + $0x190] sm:$0xff]
    %v469 = vld [vmem:[%s5 + $0x198] sm:$0xff]
    %v470 = vld [vmem:[%s5 + $0x1a0] sm:$0xff]
    %v471 = vld [vmem:[%s5 + $0x1a8] sm:$0xff]
    %v472 = vld [vmem:[%s5 + $0x1b0] sm:$0xff]
    %v473 = vld [vmem:[%s5 + $0x1b8] sm:$0xff]
    %v474 = vld [vmem:[%s5 + $0x1c0] sm:$0xff]
    %v475 = vld [vmem:[%s5 + $0x1c8] sm:$0xff]
    %v476 = vld [vmem:[%s5 + $0x1d0] sm:$0xff]
    %v477 = vld [vmem:[%s5 + $0x1d8] sm:$0xff]
    %v478 = vld [vmem:[%s5 + $0x1e0] sm:$0xff]
    %v479 = vld [vmem:[%s5 + $0x1e8] sm:$0xff]
    %v480 = vld [vmem:[%s5 + $0x1f0] sm:$0xff]
    %v481 = vld [vmem:[%s5 + $0x1f8] sm:$0xff]
    %v482 = vld [vmem:[%s6] sm:$0x1]
    %v483 = vld [vmem:[%s7] sm:$0x1]
    %v484 = vld [vmem:[%s4] sm:$0x7]
    %v485 = vld [vmem:[#allocation2] sm:$0xff]
    %v486 = vld [vmem:[#allocation2 + $0x8] sm:$0xff]
    %v487 = vld [vmem:[#allocation2 + $0x10] sm:$0xff]
    %v488 = vld [vmem:[#allocation2 + $0x18] sm:$0xff]
    %v489 = vld [vmem:[#allocation2 + $0x20] sm:$0xff]
    %v490 = vld [vmem:[#allocation2 + $0x28] sm:$0xff]
    %v492 = vperm.slane %v484, 0
    %v493 = vperm.slane %v484, 1
    %v494 = vperm.slane %v484, 2
    %v498 = vsub.f32 %v485, %v492
    %v499 = vsub.f32 %v486, %v493
    %v500 = vsub.f32 %v487, %v494
    %v501 = vsub.f32 %v488, %v492
    %v502 = vsub.f32 %v489, %v493
    %v503 = vsub.f32 %v490, %v494
    %v504 = vxor.u32 %v498, 2147483648
    %v505 = vxor.u32 %v501, 2147483648
    %v506 = vmul.f32 %v504, 1.442695
    %v507 = vpow.pop %v506
    %v508 = vmul.f32 %v505, 1.442695
    %v509 = vpow.pop %v508
    %v510 = vadd.f32 %v507, 1.0
    %v511 = vadd.f32 %v509, 1.0
    %v512 = vrcp.pop %v510
    %v513 = vmul.f32 %v510, %v512
    %v514 = vsub.f32 1.0, %v513
    %v515 = vmul.f32 %v512, %v514
    %v516 = vadd.f32 %v512, %v515
    %vm517 = vweird.f32 %v510
    %vm518 = vweird.f32 %v512
    %vm519 = vmor %vm517, %vm518
    %v520 = vsel %vm519, %v512, %v516
    %v521 = vand.u32 2147483647, %v510
    %vm522 = vcmp.eq.f32.partialorder %v521, 8.507059e+37
    %v523 = vand.u32 %v510, 2147483648
    %v524 = vor.u32 1.1754944e-38, %v523
    %v525 = vsel %vm522, %v524, %v520
    %v526 = vmul.f32 1.0, %v525
    %v527 = vrcp.pop %v511
    %v528 = vmul.f32 %v511, %v527
    %v529 = vsub.f32 1.0, %v528
    %v530 = vmul.f32 %v527, %v529
    %v531 = vadd.f32 %v527, %v530
    %vm532 = vweird.f32 %v511
    %vm533 = vweird.f32 %v527
    %vm534 = vmor %vm532, %vm533
    %v535 = vsel %vm534, %v527, %v531
    %v536 = vand.u32 2147483647, %v511
    %vm537 = vcmp.eq.f32.partialorder %v536, 8.507059e+37
    %v538 = vand.u32 %v511, 2147483648
    %v539 = vor.u32 1.1754944e-38, %v538
    %v540 = vsel %vm537, %v539, %v535
    %v541 = vmul.f32 1.0, %v540
    %v542 = vxor.u32 %v499, 2147483648
    %v543 = vxor.u32 %v502, 2147483648
    %v544 = vmul.f32 %v542, 1.442695
    %v545 = vpow.pop %v544
    %v546 = vmul.f32 %v543, 1.442695
    %v547 = vpow.pop %v546
    %v548 = vadd.f32 %v545, 1.0
    %v549 = vadd.f32 %v547, 1.0
    %v550 = vrcp.pop %v548
    %v551 = vmul.f32 %v548, %v550
    %v552 = vsub.f32 1.0, %v551
    %v553 = vmul.f32 %v550, %v552
    %v554 = vadd.f32 %v550, %v553
    %vm555 = vweird.f32 %v548
    %vm556 = vweird.f32 %v550
    %vm557 = vmor %vm555, %vm556
    %v558 = vsel %vm557, %v550, %v554
    %v559 = vand.u32 2147483647, %v548
    %vm560 = vcmp.eq.f32.partialorder %v559, 8.507059e+37
    %v561 = vand.u32 %v548, 2147483648
    %v562 = vor.u32 1.1754944e-38, %v561
    %v563 = vsel %vm560, %v562, %v558
    %v564 = vmul.f32 1.0, %v563
    %v565 = vrcp.pop %v549
    %v566 = vmul.f32 %v549, %v565
    %v567 = vsub.f32 1.0, %v566
    %v568 = vmul.f32 %v565, %v567
    %v569 = vadd.f32 %v565, %v568
    %vm570 = vweird.f32 %v549
    %vm571 = vweird.f32 %v565
    %vm572 = vmor %vm570, %vm571
    %v573 = vsel %vm572, %v565, %v569
    %v574 = vand.u32 2147483647, %v549
    %vm575 = vcmp.eq.f32.partialorder %v574, 8.507059e+37
    %v576 = vand.u32 %v549, 2147483648
    %v577 = vor.u32 1.1754944e-38, %v576
    %v578 = vsel %vm575, %v577, %v573
    %v579 = vmul.f32 1.0, %v578
    %v581 = vperm.slane %v482, 0
    %v583 = vmul.f32 %v526, %v581
    %v584 = vmul.f32 %v541, %v581
    %v585 = vadd.f32 %v500, %v583
    %v586 = vadd.f32 %v503, %v584
    %v587 = vtanh.pop %v585
    %v588 = vtanh.pop %v586
    %v589 = vsub.f32 1.0, %v564
    %v590 = vsub.f32 1.0, %v579
    %v591 = vmul.f32 %v589, %v587
    %v592 = vmul.f32 %v590, %v588
    %v593 = vld [vmem:[#allocation2 + $0x30] sm:$0xff]
    %v594 = vld [vmem:[#allocation2 + $0x38] sm:$0xff]
    %v595 = vld [vmem:[#allocation2 + $0x40] sm:$0xff]
    %v596 = vld [vmem:[#allocation2 + $0x48] sm:$0xff]
    %v597 = vld [vmem:[#allocation2 + $0x50] sm:$0xff]
    %v598 = vld [vmem:[#allocation2 + $0x58] sm:$0xff]
    %599 = vmatpush.msra.mxu0 %v478
    %600 = vmatpush.msra.mxu0 %v474
    %601 = vmatpush.msra.mxu0 %v470
    %602 = vmatpush.msra.mxu0 %v466
    %603 = vmatpush.msra.mxu0 %v462
    %604 = vmatpush.msra.mxu0 %v458
    %605 = vmatpush.msra.mxu0 %v454
    %606 = vmatpush.msra.mxu0 %v450
    %607 = vmatpush.msra.mxu0 %v446
    %608 = vmatpush.msra.mxu0 %v442
    %609 = vmatpush.msra.mxu0 %v438
    %610 = vmatpush.msra.mxu0 %v434
    %611 = vmatpush.msra.mxu0 %v430
    %612 = vmatpush.msra.mxu0 %v426
    %613 = vmatpush.msra.mxu0 %v422
    %614 = vmatpush.msra.mxu0 %v418
    %615 = vmatmul.f32.gmra.mxu0 %v591
    %v616 = vpop.f32.mrf.mxu0
    %v617 = vadd.f32 0.0, %v616
    %618 = vmatmul.f32.gmra.mxu0 %v592
    %v619 = vpop.f32.mrf.mxu0
    %v620 = vadd.f32 0.0, %v619
    %621 = vdwg.mxu0
    %622 = vmatpush.msra.mxu0 %v479
    %623 = vmatpush.msra.mxu0 %v475
    %624 = vmatpush.msra.mxu0 %v471
    %625 = vmatpush.msra.mxu0 %v467
    %626 = vmatpush.msra.mxu0 %v463
    %627 = vmatpush.msra.mxu0 %v459
    %628 = vmatpush.msra.mxu0 %v455
    %629 = vmatpush.msra.mxu0 %v451
    %630 = vmatpush.msra.mxu0 %v447
    %631 = vmatpush.msra.mxu0 %v443
    %632 = vmatpush.msra.mxu0 %v439
    %633 = vmatpush.msra.mxu0 %v435
    %634 = vmatpush.msra.mxu0 %v431
    %635 = vmatpush.msra.mxu0 %v427
    %636 = vmatpush.msra.mxu0 %v423
    %637 = vmatpush.msra.mxu0 %v419
    %638 = vmatmul.f32.gmra.mxu0 %v591
    %v639 = vpop.f32.mrf.mxu0
    %v640 = vadd.f32 0.0, %v639
    %641 = vmatmul.f32.gmra.mxu0 %v592
    %v642 = vpop.f32.mrf.mxu0
    %v643 = vadd.f32 0.0, %v642
    %644 = vdwg.mxu0
    %645 = vmatpush.msra.mxu0 %v480
    %646 = vmatpush.msra.mxu0 %v476
    %647 = vmatpush.msra.mxu0 %v472
    %648 = vmatpush.msra.mxu0 %v468
    %649 = vmatpush.msra.mxu0 %v464
    %650 = vmatpush.msra.mxu0 %v460
    %651 = vmatpush.msra.mxu0 %v456
    %652 = vmatpush.msra.mxu0 %v452
    %653 = vmatpush.msra.mxu0 %v448
    %654 = vmatpush.msra.mxu0 %v444
    %655 = vmatpush.msra.mxu0 %v440
    %656 = vmatpush.msra.mxu0 %v436
    %657 = vmatpush.msra.mxu0 %v432
    %658 = vmatpush.msra.mxu0 %v428
    %659 = vmatpush.msra.mxu0 %v424
    %660 = vmatpush.msra.mxu0 %v420
    %661 = vmatmul.f32.gmra.mxu0 %v591
    %v662 = vpop.f32.mrf.mxu0
    %v663 = vadd.f32 0.0, %v662
    %664 = vmatmul.f32.gmra.mxu0 %v592
    %v665 = vpop.f32.mrf.mxu0
    %v666 = vadd.f32 0.0, %v665
    %667 = vdwg.mxu0
    %668 = vmatpush.msra.mxu0 %v481
    %669 = vmatpush.msra.mxu0 %v477
    %670 = vmatpush.msra.mxu0 %v473
    %671 = vmatpush.msra.mxu0 %v469
    %672 = vmatpush.msra.mxu0 %v465
    %673 = vmatpush.msra.mxu0 %v461
    %674 = vmatpush.msra.mxu0 %v457
    %675 = vmatpush.msra.mxu0 %v453
    %676 = vmatpush.msra.mxu0 %v449
    %677 = vmatpush.msra.mxu0 %v445
    %678 = vmatpush.msra.mxu0 %v441
    %679 = vmatpush.msra.mxu0 %v437
    %680 = vmatpush.msra.mxu0 %v433
    %681 = vmatpush.msra.mxu0 %v429
    %682 = vmatpush.msra.mxu0 %v425
    %683 = vmatpush.msra.mxu0 %v421
    %684 = vmatmul.f32.gmra.mxu0 %v591
    %v685 = vpop.f32.mrf.mxu0
    %v686 = vadd.f32 0.0, %v685
    %687 = vmatmul.f32.gmra.mxu0 %v592
    %v688 = vpop.f32.mrf.mxu0
    %v689 = vadd.f32 0.0, %v688
    %690 = vdwg.mxu0
    %v691 = vadd.f32 %v593, %v617
    %v692 = vadd.f32 %v596, %v620
    %v693 = vxor.u32 %v691, 2147483648
    %v694 = vxor.u32 %v692, 2147483648
    %v695 = vmul.f32 %v693, 1.442695
    %v696 = vpow.pop %v695
    %v697 = vmul.f32 %v694, 1.442695
    %v698 = vpow.pop %v697
    %v699 = vadd.f32 %v696, 1.0
    %v700 = vadd.f32 %v698, 1.0
    %v701 = vrcp.pop %v699
    %v702 = vmul.f32 %v699, %v701
    %v703 = vsub.f32 1.0, %v702
    %v704 = vmul.f32 %v701, %v703
    %v705 = vadd.f32 %v701, %v704
    %vm706 = vweird.f32 %v699
    %vm707 = vweird.f32 %v701
    %vm708 = vmor %vm706, %vm707
    %v709 = vsel %vm708, %v701, %v705
    %v710 = vand.u32 2147483647, %v699
    %vm711 = vcmp.eq.f32.partialorder %v710, 8.507059e+37
    %v712 = vand.u32 %v699, 2147483648
    %v713 = vor.u32 1.1754944e-38, %v712
    %v714 = vsel %vm711, %v713, %v709
    %v715 = vmul.f32 1.0, %v714
    %v716 = vrcp.pop %v700
    %v717 = vmul.f32 %v700, %v716
    %v718 = vsub.f32 1.0, %v717
    %v719 = vmul.f32 %v716, %v718
    %v720 = vadd.f32 %v716, %v719
    %vm721 = vweird.f32 %v700
    %vm722 = vweird.f32 %v716
    %vm723 = vmor %vm721, %vm722
    %v724 = vsel %vm723, %v716, %v720
    %v725 = vand.u32 2147483647, %v700
    %vm726 = vcmp.eq.f32.partialorder %v725, 8.507059e+37
    %v727 = vand.u32 %v700, 2147483648
    %v728 = vor.u32 1.1754944e-38, %v727
    %v729 = vsel %vm726, %v728, %v724
    %v730 = vmul.f32 1.0, %v729
    %v731 = vadd.f32 %v594, %v640
    %v732 = vadd.f32 %v597, %v643
    %v733 = vxor.u32 %v731, 2147483648
    %v734 = vxor.u32 %v732, 2147483648
    %v735 = vmul.f32 %v733, 1.442695
    %v736 = vpow.pop %v735
    %v737 = vmul.f32 %v734, 1.442695
    %v738 = vpow.pop %v737
    %v739 = vadd.f32 %v736, 1.0
    %v740 = vadd.f32 %v738, 1.0
    %v741 = vrcp.pop %v739
    %v742 = vmul.f32 %v739, %v741
    %v743 = vsub.f32 1.0, %v742
    %v744 = vmul.f32 %v741, %v743
    %v745 = vadd.f32 %v741, %v744
    %vm746 = vweird.f32 %v739
    %vm747 = vweird.f32 %v741
    %vm748 = vmor %vm746, %vm747
    %v749 = vsel %vm748, %v741, %v745
    %v750 = vand.u32 2147483647, %v739
    %vm751 = vcmp.eq.f32.partialorder %v750, 8.507059e+37
    %v752 = vand.u32 %v739, 2147483648
    %v753 = vor.u32 1.1754944e-38, %v752
    %v754 = vsel %vm751, %v753, %v749
    %v755 = vmul.f32 1.0, %v754
    %v756 = vrcp.pop %v740
    %v757 = vmul.f32 %v740, %v756
    %v758 = vsub.f32 1.0, %v757
    %v759 = vmul.f32 %v756, %v758
    %v760 = vadd.f32 %v756, %v759
    %vm761 = vweird.f32 %v740
    %vm762 = vweird.f32 %v756
    %vm763 = vmor %vm761, %vm762
    %v764 = vsel %vm763, %v756, %v760
    %v765 = vand.u32 2147483647, %v740
    %vm766 = vcmp.eq.f32.partialorder %v765, 8.507059e+37
    %v767 = vand.u32 %v740, 2147483648
    %v768 = vor.u32 1.1754944e-38, %v767
    %v769 = vsel %vm766, %v768, %v764
    %v770 = vmul.f32 1.0, %v769
    %v772 = vperm.slane %v483, 0
    %v774 = vmul.f32 %v686, %v772
    %v775 = vmul.f32 %v689, %v772
    %v776 = vadd.f32 %v595, %v774
    %v777 = vadd.f32 %v598, %v775
    %v778 = vadd.f32 %v663, %v581
    %v779 = vadd.f32 %v666, %v581
    %v780 = vmul.f32 %v715, %v778
    %v781 = vmul.f32 %v730, %v779
    %v782 = vadd.f32 %v776, %v780
    %v783 = vadd.f32 %v777, %v781
    %v784 = vtanh.pop %v782
    %v785 = vtanh.pop %v783
    %v786 = vsub.f32 1.0, %v755
    %v787 = vsub.f32 1.0, %v770
    %v788 = vmul.f32 %v786, %v784
    %v789 = vmul.f32 %v787, %v785
    %v790 = vmul.f32 %v755, %v591
    %v791 = vmul.f32 %v770, %v592
    %v792 = vadd.f32 %v788, %v790
    %v793 = vadd.f32 %v789, %v791
    %v794 = vld [vmem:[#allocation2 + $0x60] sm:$0xff]
    %v795 = vld [vmem:[#allocation2 + $0x68] sm:$0xff]
    %v796 = vld [vmem:[#allocation2 + $0x70] sm:$0xff]
    %v797 = vld [vmem:[#allocation2 + $0x78] sm:$0xff]
    %v798 = vld [vmem:[#allocation2 + $0x80] sm:$0xff]
    %v799 = vld [vmem:[#allocation2 + $0x88] sm:$0xff]
    %800 = vmatpush.msra.mxu0 %v478
    %801 = vmatpush.msra.mxu0 %v474
    %802 = vmatpush.msra.mxu0 %v470
    %803 = vmatpush.msra.mxu0 %v466
    %804 = vmatpush.msra.mxu0 %v462
    %805 = vmatpush.msra.mxu0 %v458
    %806 = vmatpush.msra.mxu0 %v454
    %807 = vmatpush.msra.mxu0 %v450
    %808 = vmatpush.msra.mxu0 %v446
    %809 = vmatpush.msra.mxu0 %v442
    %810 = vmatpush.msra.mxu0 %v438
    %811 = vmatpush.msra.mxu0 %v434
    %812 = vmatpush.msra.mxu0 %v430
    %813 = vmatpush.msra.mxu0 %v426
    %814 = vmatpush.msra.mxu0 %v422
    %815 = vmatpush.msra.mxu0 %v418
    %816 = vmatmul.f32.gmra.mxu0 %v792
    %v817 = vpop.f32.mrf.mxu0
    %v818 = vadd.f32 0.0, %v817
    %819 = vmatmul.f32.gmra.mxu0 %v793
    %v820 = vpop.f32.mrf.mxu0
    %v821 = vadd.f32 0.0, %v820
    %822 = vdwg.mxu0
    %823 = vmatpush.msra.mxu0 %v479
    %824 = vmatpush.msra.mxu0 %v475
    %825 = vmatpush.msra.mxu0 %v471
    %826 = vmatpush.msra.mxu0 %v467
    %827 = vmatpush.msra.mxu0 %v463
    %828 = vmatpush.msra.mxu0 %v459
    %829 = vmatpush.msra.mxu0 %v455
    %830 = vmatpush.msra.mxu0 %v451
    %831 = vmatpush.msra.mxu0 %v447
    %832 = vmatpush.msra.mxu0 %v443
    %833 = vmatpush.msra.mxu0 %v439
    %834 = vmatpush.msra.mxu0 %v435
    %835 = vmatpush.msra.mxu0 %v431
    %836 = vmatpush.msra.mxu0 %v427
    %837 = vmatpush.msra.mxu0 %v423
    %838 = vmatpush.msra.mxu0 %v419
    %839 = vmatmul.f32.gmra.mxu0 %v792
    %v840 = vpop.f32.mrf.mxu0
    %v841 = vadd.f32 0.0, %v840
    %842 = vmatmul.f32.gmra.mxu0 %v793
    %v843 = vpop.f32.mrf.mxu0
    %v844 = vadd.f32 0.0, %v843
    %845 = vdwg.mxu0
    %846 = vmatpush.msra.mxu0 %v480
    %847 = vmatpush.msra.mxu0 %v476
    %848 = vmatpush.msra.mxu0 %v472
    %849 = vmatpush.msra.mxu0 %v468
    %850 = vmatpush.msra.mxu0 %v464
    %851 = vmatpush.msra.mxu0 %v460
    %852 = vmatpush.msra.mxu0 %v456
    %853 = vmatpush.msra.mxu0 %v452
    %854 = vmatpush.msra.mxu0 %v448
    %855 = vmatpush.msra.mxu0 %v444
    %856 = vmatpush.msra.mxu0 %v440
    %857 = vmatpush.msra.mxu0 %v436
    %858 = vmatpush.msra.mxu0 %v432
    %859 = vmatpush.msra.mxu0 %v428
    %860 = vmatpush.msra.mxu0 %v424
    %861 = vmatpush.msra.mxu0 %v420
    %862 = vmatmul.f32.gmra.mxu0 %v792
    %v863 = vpop.f32.mrf.mxu0
    %v864 = vadd.f32 0.0, %v863
    %865 = vmatmul.f32.gmra.mxu0 %v793
    %v866 = vpop.f32.mrf.mxu0
    %v867 = vadd.f32 0.0, %v866
    %868 = vdwg.mxu0
    %869 = vmatpush.msra.mxu0 %v481
    %870 = vmatpush.msra.mxu0 %v477
    %871 = vmatpush.msra.mxu0 %v473
    %872 = vmatpush.msra.mxu0 %v469
    %873 = vmatpush.msra.mxu0 %v465
    %874 = vmatpush.msra.mxu0 %v461
    %875 = vmatpush.msra.mxu0 %v457
    %876 = vmatpush.msra.mxu0 %v453
    %877 = vmatpush.msra.mxu0 %v449
    %878 = vmatpush.msra.mxu0 %v445
    %879 = vmatpush.msra.mxu0 %v441
    %880 = vmatpush.msra.mxu0 %v437
    %881 = vmatpush.msra.mxu0 %v433
    %882 = vmatpush.msra.mxu0 %v429
    %883 = vmatpush.msra.mxu0 %v425
    %884 = vmatpush.msra.mxu0 %v421
    %885 = vmatmul.f32.gmra.mxu0 %v792
    %v886 = vpop.f32.mrf.mxu0
    %v887 = vadd.f32 0.0, %v886
    %888 = vmatmul.f32.gmra.mxu0 %v793
    %v889 = vpop.f32.mrf.mxu0
    %v890 = vadd.f32 0.0, %v889
    %891 = vdwg.mxu0
    %v892 = vadd.f32 %v794, %v818
    %v893 = vadd.f32 %v797, %v821
    %v894 = vxor.u32 %v892, 2147483648
    %v895 = vxor.u32 %v893, 2147483648
    %v896 = vmul.f32 %v894, 1.442695
    %v897 = vpow.pop %v896
    %v898 = vmul.f32 %v895, 1.442695
    %v899 = vpow.pop %v898
    %v900 = vadd.f32 %v897, 1.0
    %v901 = vadd.f32 %v899, 1.0
    %v902 = vrcp.pop %v900
    %v903 = vmul.f32 %v900, %v902
    %v904 = vsub.f32 1.0, %v903
    %v905 = vmul.f32 %v902, %v904
    %v906 = vadd.f32 %v902, %v905
    %vm907 = vweird.f32 %v900
    %vm908 = vweird.f32 %v902
    %vm909 = vmor %vm907, %vm908
    %v910 = vsel %vm909, %v902, %v906
    %v911 = vand.u32 2147483647, %v900
    %vm912 = vcmp.eq.f32.partialorder %v911, 8.507059e+37
    %v913 = vand.u32 %v900, 2147483648
    %v914 = vor.u32 1.1754944e-38, %v913
    %v915 = vsel %vm912, %v914, %v910
    %v916 = vmul.f32 1.0, %v915
    %v917 = vrcp.pop %v901
    %v918 = vmul.f32 %v901, %v917
    %v919 = vsub.f32 1.0, %v918
    %v920 = vmul.f32 %v917, %v919
    %v921 = vadd.f32 %v917, %v920
    %vm922 = vweird.f32 %v901
    %vm923 = vweird.f32 %v917
    %vm924 = vmor %vm922, %vm923
    %v925 = vsel %vm924, %v917, %v921
    %v926 = vand.u32 2147483647, %v901
    %vm927 = vcmp.eq.f32.partialorder %v926, 8.507059e+37
    %v928 = vand.u32 %v901, 2147483648
    %v929 = vor.u32 1.1754944e-38, %v928
    %v930 = vsel %vm927, %v929, %v925
    %v931 = vmul.f32 1.0, %v930
    %v932 = vadd.f32 %v795, %v841
    %v933 = vadd.f32 %v798, %v844
    %v934 = vxor.u32 %v932, 2147483648
    %v935 = vxor.u32 %v933, 2147483648
    %v936 = vmul.f32 %v934, 1.442695
    %v937 = vpow.pop %v936
    %v938 = vmul.f32 %v935, 1.442695
    %v939 = vpow.pop %v938
    %v940 = vadd.f32 %v937, 1.0
    %v941 = vadd.f32 %v939, 1.0
    %v942 = vrcp.pop %v940
    %v943 = vmul.f32 %v940, %v942
    %v944 = vsub.f32 1.0, %v943
    %v945 = vmul.f32 %v942, %v944
    %v946 = vadd.f32 %v942, %v945
    %vm947 = vweird.f32 %v940
    %vm948 = vweird.f32 %v942
    %vm949 = vmor %vm947, %vm948
    %v950 = vsel %vm949, %v942, %v946
    %v951 = vand.u32 2147483647, %v940
    %vm952 = vcmp.eq.f32.partialorder %v951, 8.507059e+37
    %v953 = vand.u32 %v940, 2147483648
    %v954 = vor.u32 1.1754944e-38, %v953
    %v955 = vsel %vm952, %v954, %v950
    %v956 = vmul.f32 1.0, %v955
    %v957 = vrcp.pop %v941
    %v958 = vmul.f32 %v941, %v957
    %v959 = vsub.f32 1.0, %v958
    %v960 = vmul.f32 %v957, %v959
    %v961 = vadd.f32 %v957, %v960
    %vm962 = vweird.f32 %v941
    %vm963 = vweird.f32 %v957
    %vm964 = vmor %vm962, %vm963
    %v965 = vsel %vm964, %v957, %v961
    %v966 = vand.u32 2147483647, %v941
    %vm967 = vcmp.eq.f32.partialorder %v966, 8.507059e+37
    %v968 = vand.u32 %v941, 2147483648
    %v969 = vor.u32 1.1754944e-38, %v968
    %v970 = vsel %vm967, %v969, %v965
    %v971 = vmul.f32 1.0, %v970
    %v972 = vmul.f32 %v887, %v772
    %v973 = vmul.f32 %v890, %v772
    %v974 = vadd.f32 %v796, %v972
    %v975 = vadd.f32 %v799, %v973
    %v976 = vadd.f32 %v864, %v581
    %v977 = vadd.f32 %v867, %v581
    %v978 = vmul.f32 %v916, %v976
    %v979 = vmul.f32 %v931, %v977
    %v980 = vadd.f32 %v974, %v978
    %v981 = vadd.f32 %v975, %v979
    %v982 = vtanh.pop %v980
    %v983 = vtanh.pop %v981
    %v984 = vsub.f32 1.0, %v956
    %v985 = vsub.f32 1.0, %v971
    %v986 = vmul.f32 %v984, %v982
    %v987 = vmul.f32 %v985, %v983
    %v988 = vmul.f32 %v956, %v792
    %v989 = vmul.f32 %v971, %v793
    %v990 = vadd.f32 %v986, %v988
    %v991 = vadd.f32 %v987, %v989
    %v992 = vld [vmem:[#allocation2 + $0x90] sm:$0xff]
    %v993 = vld [vmem:[#allocation2 + $0x98] sm:$0xff]
    %v994 = vld [vmem:[#allocation2 + $0xa0] sm:$0xff]
    %v995 = vld [vmem:[#allocation2 + $0xa8] sm:$0xff]
    %v996 = vld [vmem:[#allocation2 + $0xb0] sm:$0xff]
    %v997 = vld [vmem:[#allocation2 + $0xb8] sm:$0xff]
    %998 = vmatpush.msra.mxu0 %v478
    %999 = vmatpush.msra.mxu0 %v474
    %1000 = vmatpush.msra.mxu0 %v470
    %1001 = vmatpush.msra.mxu0 %v466
    %1002 = vmatpush.msra.mxu0 %v462
    %1003 = vmatpush.msra.mxu0 %v458
    %1004 = vmatpush.msra.mxu0 %v454
    %1005 = vmatpush.msra.mxu0 %v450
    %1006 = vmatpush.msra.mxu0 %v446
    %1007 = vmatpush.msra.mxu0 %v442
    %1008 = vmatpush.msra.mxu0 %v438
    %1009 = vmatpush.msra.mxu0 %v434
    %1010 = vmatpush.msra.mxu0 %v430
    %1011 = vmatpush.msra.mxu0 %v426
    %1012 = vmatpush.msra.mxu0 %v422
    %1013 = vmatpush.msra.mxu0 %v418
    %1014 = vmatmul.f32.gmra.mxu0 %v990
    %v1015 = vpop.f32.mrf.mxu0
    %v1016 = vadd.f32 0.0, %v1015
    %1017 = vmatmul.f32.gmra.mxu0 %v991
    %v1018 = vpop.f32.mrf.mxu0
    %v1019 = vadd.f32 0.0, %v1018
    %1020 = vdwg.mxu0
    %1021 = vmatpush.msra.mxu0 %v479
    %1022 = vmatpush.msra.mxu0 %v475
    %1023 = vmatpush.msra.mxu0 %v471
    %1024 = vmatpush.msra.mxu0 %v467
    %1025 = vmatpush.msra.mxu0 %v463
    %1026 = vmatpush.msra.mxu0 %v459
    %1027 = vmatpush.msra.mxu0 %v455
    %1028 = vmatpush.msra.mxu0 %v451
    %1029 = vmatpush.msra.mxu0 %v447
    %1030 = vmatpush.msra.mxu0 %v443
    %1031 = vmatpush.msra.mxu0 %v439
    %1032 = vmatpush.msra.mxu0 %v435
    %1033 = vmatpush.msra.mxu0 %v431
    %1034 = vmatpush.msra.mxu0 %v427
    %1035 = vmatpush.msra.mxu0 %v423
    %1036 = vmatpush.msra.mxu0 %v419
    %1037 = vmatmul.f32.gmra.mxu0 %v990
    %v1038 = vpop.f32.mrf.mxu0
    %v1039 = vadd.f32 0.0, %v1038
    %1040 = vmatmul.f32.gmra.mxu0 %v991
    %v1041 = vpop.f32.mrf.mxu0
    %v1042 = vadd.f32 0.0, %v1041
    %1043 = vdwg.mxu0
    %1044 = vmatpush.msra.mxu0 %v480
    %1045 = vmatpush.msra.mxu0 %v476
    %1046 = vmatpush.msra.mxu0 %v472
    %1047 = vmatpush.msra.mxu0 %v468
    %1048 = vmatpush.msra.mxu0 %v464
    %1049 = vmatpush.msra.mxu0 %v460
    %1050 = vmatpush.msra.mxu0 %v456
    %1051 = vmatpush.msra.mxu0 %v452
    %1052 = vmatpush.msra.mxu0 %v448
    %1053 = vmatpush.msra.mxu0 %v444
    %1054 = vmatpush.msra.mxu0 %v440
    %1055 = vmatpush.msra.mxu0 %v436
    %1056 = vmatpush.msra.mxu0 %v432
    %1057 = vmatpush.msra.mxu0 %v428
    %1058 = vmatpush.msra.mxu0 %v424
    %1059 = vmatpush.msra.mxu0 %v420
    %1060 = vmatmul.f32.gmra.mxu0 %v990
    %v1061 = vpop.f32.mrf.mxu0
    %v1062 = vadd.f32 0.0, %v1061
    %1063 = vmatmul.f32.gmra.mxu0 %v991
    %v1064 = vpop.f32.mrf.mxu0
    %v1065 = vadd.f32 0.0, %v1064
    %1066 = vdwg.mxu0
    %1067 = vmatpush.msra.mxu0 %v481
    %1068 = vmatpush.msra.mxu0 %v477
    %1069 = vmatpush.msra.mxu0 %v473
    %1070 = vmatpush.msra.mxu0 %v469
    %1071 = vmatpush.msra.mxu0 %v465
    %1072 = vmatpush.msra.mxu0 %v461
    %1073 = vmatpush.msra.mxu0 %v457
    %1074 = vmatpush.msra.mxu0 %v453
    %1075 = vmatpush.msra.mxu0 %v449
    %1076 = vmatpush.msra.mxu0 %v445
    %1077 = vmatpush.msra.mxu0 %v441
    %1078 = vmatpush.msra.mxu0 %v437
    %1079 = vmatpush.msra.mxu0 %v433
    %1080 = vmatpush.msra.mxu0 %v429
    %1081 = vmatpush.msra.mxu0 %v425
    %1082 = vmatpush.msra.mxu0 %v421
    %1083 = vmatmul.f32.gmra.mxu0 %v990
    %v1084 = vpop.f32.mrf.mxu0
    %v1085 = vadd.f32 0.0, %v1084
    %1086 = vmatmul.f32.gmra.mxu0 %v991
    %v1087 = vpop.f32.mrf.mxu0
    %v1088 = vadd.f32 0.0, %v1087
    %1089 = vdwg.mxu0
    %v1090 = vadd.f32 %v992, %v1016
    %v1091 = vadd.f32 %v995, %v1019
    %v1092 = vxor.u32 %v1090, 2147483648
    %v1093 = vxor.u32 %v1091, 2147483648
    %v1094 = vmul.f32 %v1092, 1.442695
    %v1095 = vpow.pop %v1094
    %v1096 = vmul.f32 %v1093, 1.442695
    %v1097 = vpow.pop %v1096
    %v1098 = vadd.f32 %v1095, 1.0
    %v1099 = vadd.f32 %v1097, 1.0
    %v1100 = vrcp.pop %v1098
    %v1101 = vmul.f32 %v1098, %v1100
    %v1102 = vsub.f32 1.0, %v1101
    %v1103 = vmul.f32 %v1100, %v1102
    %v1104 = vadd.f32 %v1100, %v1103
    %vm1105 = vweird.f32 %v1098
    %vm1106 = vweird.f32 %v1100
    %vm1107 = vmor %vm1105, %vm1106
    %v1108 = vsel %vm1107, %v1100, %v1104
    %v1109 = vand.u32 2147483647, %v1098
    %vm1110 = vcmp.eq.f32.partialorder %v1109, 8.507059e+37
    %v1111 = vand.u32 %v1098, 2147483648
    %v1112 = vor.u32 1.1754944e-38, %v1111
    %v1113 = vsel %vm1110, %v1112, %v1108
    %v1114 = vmul.f32 1.0, %v1113
    %v1115 = vrcp.pop %v1099
    %v1116 = vmul.f32 %v1099, %v1115
    %v1117 = vsub.f32 1.0, %v1116
    %v1118 = vmul.f32 %v1115, %v1117
    %v1119 = vadd.f32 %v1115, %v1118
    %vm1120 = vweird.f32 %v1099
    %vm1121 = vweird.f32 %v1115
    %vm1122 = vmor %vm1120, %vm1121
    %v1123 = vsel %vm1122, %v1115, %v1119
    %v1124 = vand.u32 2147483647, %v1099
    %vm1125 = vcmp.eq.f32.partialorder %v1124, 8.507059e+37
    %v1126 = vand.u32 %v1099, 2147483648
    %v1127 = vor.u32 1.1754944e-38, %v1126
    %v1128 = vsel %vm1125, %v1127, %v1123
    %v1129 = vmul.f32 1.0, %v1128
    %v1130 = vadd.f32 %v993, %v1039
    %v1131 = vadd.f32 %v996, %v1042
    %v1132 = vxor.u32 %v1130, 2147483648
    %v1133 = vxor.u32 %v1131, 2147483648
    %v1134 = vmul.f32 %v1132, 1.442695
    %v1135 = vpow.pop %v1134
    %v1136 = vmul.f32 %v1133, 1.442695
    %v1137 = vpow.pop %v1136
    %v1138 = vadd.f32 %v1135, 1.0
    %v1139 = vadd.f32 %v1137, 1.0
    %v1140 = vrcp.pop %v1138
    %v1141 = vmul.f32 %v1138, %v1140
    %v1142 = vsub.f32 1.0, %v1141
    %v1143 = vmul.f32 %v1140, %v1142
    %v1144 = vadd.f32 %v1140, %v1143
    %vm1145 = vweird.f32 %v1138
    %vm1146 = vweird.f32 %v1140
    %vm1147 = vmor %vm1145, %vm1146
    %v1148 = vsel %vm1147, %v1140, %v1144
    %v1149 = vand.u32 2147483647, %v1138
    %vm1150 = vcmp.eq.f32.partialorder %v1149, 8.507059e+37
    %v1151 = vand.u32 %v1138, 2147483648
    %v1152 = vor.u32 1.1754944e-38, %v1151
    %v1153 = vsel %vm1150, %v1152, %v1148
    %v1154 = vmul.f32 1.0, %v1153
    %v1155 = vrcp.pop %v1139
    %v1156 = vmul.f32 %v1139, %v1155
    %v1157 = vsub.f32 1.0, %v1156
    %v1158 = vmul.f32 %v1155, %v1157
    %v1159 = vadd.f32 %v1155, %v1158
    %vm1160 = vweird.f32 %v1139
    %vm1161 = vweird.f32 %v1155
    %vm1162 = vmor %vm1160, %vm1161
    %v1163 = vsel %vm1162, %v1155, %v1159
    %v1164 = vand.u32 2147483647, %v1139
    %vm1165 = vcmp.eq.f32.partialorder %v1164, 8.507059e+37
    %v1166 = vand.u32 %v1139, 2147483648
    %v1167 = vor.u32 1.1754944e-38, %v1166
    %v1168 = vsel %vm1165, %v1167, %v1163
    %v1169 = vmul.f32 1.0, %v1168
    %v1170 = vmul.f32 %v1085, %v772
    %v1171 = vmul.f32 %v1088, %v772
    %v1172 = vadd.f32 %v994, %v1170
    %v1173 = vadd.f32 %v997, %v1171
    %v1174 = vadd.f32 %v1062, %v581
    %v1175 = vadd.f32 %v1065, %v581
    %v1176 = vmul.f32 %v1114, %v1174
    %v1177 = vmul.f32 %v1129, %v1175
    %v1178 = vadd.f32 %v1172, %v1176
    %v1179 = vadd.f32 %v1173, %v1177
    %v1180 = vtanh.pop %v1178
    %v1181 = vtanh.pop %v1179
    %v1182 = vsub.f32 1.0, %v1154
    %v1183 = vsub.f32 1.0, %v1169
    %v1184 = vmul.f32 %v1182, %v1180
    %v1185 = vmul.f32 %v1183, %v1181
    %v1186 = vmul.f32 %v1154, %v990
    %v1187 = vmul.f32 %v1169, %v991
    %v1188 = vadd.f32 %v1184, %v1186
    %v1189 = vadd.f32 %v1185, %v1187
    %v1190 = vld [vmem:[#allocation2 + $0xc0] sm:$0xff]
    %v1191 = vld [vmem:[#allocation2 + $0xc8] sm:$0xff]
    %v1192 = vld [vmem:[#allocation2 + $0xd0] sm:$0xff]
    %v1193 = vld [vmem:[#allocation2 + $0xd8] sm:$0xff]
    %v1194 = vld [vmem:[#allocation2 + $0xe0] sm:$0xff]
    %v1195 = vld [vmem:[#allocation2 + $0xe8] sm:$0xff]
    %1196 = vmatpush.msra.mxu0 %v478
    %1197 = vmatpush.msra.mxu0 %v474
    %1198 = vmatpush.msra.mxu0 %v470
    %1199 = vmatpush.msra.mxu0 %v466
    %1200 = vmatpush.msra.mxu0 %v462
    %1201 = vmatpush.msra.mxu0 %v458
    %1202 = vmatpush.msra.mxu0 %v454
    %1203 = vmatpush.msra.mxu0 %v450
    %1204 = vmatpush.msra.mxu0 %v446
    %1205 = vmatpush.msra.mxu0 %v442
    %1206 = vmatpush.msra.mxu0 %v438
    %1207 = vmatpush.msra.mxu0 %v434
    %1208 = vmatpush.msra.mxu0 %v430
    %1209 = vmatpush.msra.mxu0 %v426
    %1210 = vmatpush.msra.mxu0 %v422
    %1211 = vmatpush.msra.mxu0 %v418
    %1212 = vmatmul.f32.gmra.mxu0 %v1188
    %v1213 = vpop.f32.mrf.mxu0
    %v1214 = vadd.f32 0.0, %v1213
    %1215 = vmatmul.f32.gmra.mxu0 %v1189
    %v1216 = vpop.f32.mrf.mxu0
    %v1217 = vadd.f32 0.0, %v1216
    %1218 = vdwg.mxu0
    %1219 = vmatpush.msra.mxu0 %v479
    %1220 = vmatpush.msra.mxu0 %v475
    %1221 = vmatpush.msra.mxu0 %v471
    %1222 = vmatpush.msra.mxu0 %v467
    %1223 = vmatpush.msra.mxu0 %v463
    %1224 = vmatpush.msra.mxu0 %v459
    %1225 = vmatpush.msra.mxu0 %v455
    %1226 = vmatpush.msra.mxu0 %v451
    %1227 = vmatpush.msra.mxu0 %v447
    %1228 = vmatpush.msra.mxu0 %v443
    %1229 = vmatpush.msra.mxu0 %v439
    %1230 = vmatpush.msra.mxu0 %v435
    %1231 = vmatpush.msra.mxu0 %v431
    %1232 = vmatpush.msra.mxu0 %v427
    %1233 = vmatpush.msra.mxu0 %v423
    %1234 = vmatpush.msra.mxu0 %v419
    %1235 = vmatmul.f32.gmra.mxu0 %v1188
    %v1236 = vpop.f32.mrf.mxu0
    %v1237 = vadd.f32 0.0, %v1236
    %1238 = vmatmul.f32.gmra.mxu0 %v1189
    %v1239 = vpop.f32.mrf.mxu0
    %v1240 = vadd.f32 0.0, %v1239
    %1241 = vdwg.mxu0
    %1242 = vmatpush.msra.mxu0 %v480
    %1243 = vmatpush.msra.mxu0 %v476
    %1244 = vmatpush.msra.mxu0 %v472
    %1245 = vmatpush.msra.mxu0 %v468
    %1246 = vmatpush.msra.mxu0 %v464
    %1247 = vmatpush.msra.mxu0 %v460
    %1248 = vmatpush.msra.mxu0 %v456
    %1249 = vmatpush.msra.mxu0 %v452
    %1250 = vmatpush.msra.mxu0 %v448
    %1251 = vmatpush.msra.mxu0 %v444
    %1252 = vmatpush.msra.mxu0 %v440
    %1253 = vmatpush.msra.mxu0 %v436
    %1254 = vmatpush.msra.mxu0 %v432
    %1255 = vmatpush.msra.mxu0 %v428
    %1256 = vmatpush.msra.mxu0 %v424
    %1257 = vmatpush.msra.mxu0 %v420
    %1258 = vmatmul.f32.gmra.mxu0 %v1188
    %v1259 = vpop.f32.mrf.mxu0
    %v1260 = vadd.f32 0.0, %v1259
    %1261 = vmatmul.f32.gmra.mxu0 %v1189
    %v1262 = vpop.f32.mrf.mxu0
    %v1263 = vadd.f32 0.0, %v1262
    %1264 = vdwg.mxu0
    %1265 = vmatpush.msra.mxu0 %v481
    %1266 = vmatpush.msra.mxu0 %v477
    %1267 = vmatpush.msra.mxu0 %v473
    %1268 = vmatpush.msra.mxu0 %v469
    %1269 = vmatpush.msra.mxu0 %v465
    %1270 = vmatpush.msra.mxu0 %v461
    %1271 = vmatpush.msra.mxu0 %v457
    %1272 = vmatpush.msra.mxu0 %v453
    %1273 = vmatpush.msra.mxu0 %v449
    %1274 = vmatpush.msra.mxu0 %v445
    %1275 = vmatpush.msra.mxu0 %v441
    %1276 = vmatpush.msra.mxu0 %v437
    %1277 = vmatpush.msra.mxu0 %v433
    %1278 = vmatpush.msra.mxu0 %v429
    %1279 = vmatpush.msra.mxu0 %v425
    %1280 = vmatpush.msra.mxu0 %v421
    %1281 = vmatmul.f32.gmra.mxu0 %v1188
    %v1282 = vpop.f32.mrf.mxu0
    %v1283 = vadd.f32 0.0, %v1282
    %1284 = vmatmul.f32.gmra.mxu0 %v1189
    %v1285 = vpop.f32.mrf.mxu0
    %v1286 = vadd.f32 0.0, %v1285
    %1287 = vdwg.mxu0
    %v1288 = vadd.f32 %v1190, %v1214
    %v1289 = vadd.f32 %v1193, %v1217
    %v1290 = vxor.u32 %v1288, 2147483648
    %v1291 = vxor.u32 %v1289, 2147483648
    %v1292 = vmul.f32 %v1290, 1.442695
    %v1293 = vpow.pop %v1292
    %v1294 = vmul.f32 %v1291, 1.442695
    %v1295 = vpow.pop %v1294
    %v1296 = vadd.f32 %v1293, 1.0
    %v1297 = vadd.f32 %v1295, 1.0
    %v1298 = vrcp.pop %v1296
    %v1299 = vmul.f32 %v1296, %v1298
    %v1300 = vsub.f32 1.0, %v1299
    %v1301 = vmul.f32 %v1298, %v1300
    %v1302 = vadd.f32 %v1298, %v1301
    %vm1303 = vweird.f32 %v1296
    %vm1304 = vweird.f32 %v1298
    %vm1305 = vmor %vm1303, %vm1304
    %v1306 = vsel %vm1305, %v1298, %v1302
    %v1307 = vand.u32 2147483647, %v1296
    %vm1308 = vcmp.eq.f32.partialorder %v1307, 8.507059e+37
    %v1309 = vand.u32 %v1296, 2147483648
    %v1310 = vor.u32 1.1754944e-38, %v1309
    %v1311 = vsel %vm1308, %v1310, %v1306
    %v1312 = vmul.f32 1.0, %v1311
    %v1313 = vrcp.pop %v1297
    %v1314 = vmul.f32 %v1297, %v1313
    %v1315 = vsub.f32 1.0, %v1314
    %v1316 = vmul.f32 %v1313, %v1315
    %v1317 = vadd.f32 %v1313, %v1316
    %vm1318 = vweird.f32 %v1297
    %vm1319 = vweird.f32 %v1313
    %vm1320 = vmor %vm1318, %vm1319
    %v1321 = vsel %vm1320, %v1313, %v1317
    %v1322 = vand.u32 2147483647, %v1297
    %vm1323 = vcmp.eq.f32.partialorder %v1322, 8.507059e+37
    %v1324 = vand.u32 %v1297, 2147483648
    %v1325 = vor.u32 1.1754944e-38, %v1324
    %v1326 = vsel %vm1323, %v1325, %v1321
    %v1327 = vmul.f32 1.0, %v1326
    %v1328 = vadd.f32 %v1191, %v1237
    %v1329 = vadd.f32 %v1194, %v1240
    %v1330 = vxor.u32 %v1328, 2147483648
    %v1331 = vxor.u32 %v1329, 2147483648
    %v1332 = vmul.f32 %v1330, 1.442695
    %v1333 = vpow.pop %v1332
    %v1334 = vmul.f32 %v1331, 1.442695
    %v1335 = vpow.pop %v1334
    %v1336 = vadd.f32 %v1333, 1.0
    %v1337 = vadd.f32 %v1335, 1.0
    %v1338 = vrcp.pop %v1336
    %v1339 = vmul.f32 %v1336, %v1338
    %v1340 = vsub.f32 1.0, %v1339
    %v1341 = vmul.f32 %v1338, %v1340
    %v1342 = vadd.f32 %v1338, %v1341
    %vm1343 = vweird.f32 %v1336
    %vm1344 = vweird.f32 %v1338
    %vm1345 = vmor %vm1343, %vm1344
    %v1346 = vsel %vm1345, %v1338, %v1342
    %v1347 = vand.u32 2147483647, %v1336
    %vm1348 = vcmp.eq.f32.partialorder %v1347, 8.507059e+37
    %v1349 = vand.u32 %v1336, 2147483648
    %v1350 = vor.u32 1.1754944e-38, %v1349
    %v1351 = vsel %vm1348, %v1350, %v1346
    %v1352 = vmul.f32 1.0, %v1351
    %v1353 = vrcp.pop %v1337
    %v1354 = vmul.f32 %v1337, %v1353
    %v1355 = vsub.f32 1.0, %v1354
    %v1356 = vmul.f32 %v1353, %v1355
    %v1357 = vadd.f32 %v1353, %v1356
    %vm1358 = vweird.f32 %v1337
    %vm1359 = vweird.f32 %v1353
    %vm1360 = vmor %vm1358, %vm1359
    %v1361 = vsel %vm1360, %v1353, %v1357
    %v1362 = vand.u32 2147483647, %v1337
    %vm1363 = vcmp.eq.f32.partialorder %v1362, 8.507059e+37
    %v1364 = vand.u32 %v1337, 2147483648
    %v1365 = vor.u32 1.1754944e-38, %v1364
    %v1366 = vsel %vm1363, %v1365, %v1361
    %v1367 = vmul.f32 1.0, %v1366
    %v1368 = vmul.f32 %v1283, %v772
    %v1369 = vmul.f32 %v1286, %v772
    %v1370 = vadd.f32 %v1192, %v1368
    %v1371 = vadd.f32 %v1195, %v1369
    %v1372 = vadd.f32 %v1260, %v581
    %v1373 = vadd.f32 %v1263, %v581
    %v1374 = vmul.f32 %v1312, %v1372
    %v1375 = vmul.f32 %v1327, %v1373
    %v1376 = vadd.f32 %v1370, %v1374
    %v1377 = vadd.f32 %v1371, %v1375
    %v1378 = vtanh.pop %v1376
    %v1379 = vtanh.pop %v1377
    %v1380 = vsub.f32 1.0, %v1352
    %v1381 = vsub.f32 1.0, %v1367
    %v1382 = vmul.f32 %v1380, %v1378
    %v1383 = vmul.f32 %v1381, %v1379
    %v1384 = vmul.f32 %v1352, %v1188
    %v1385 = vmul.f32 %v1367, %v1189
    %v1386 = vadd.f32 %v1382, %v1384
    %v1387 = vadd.f32 %v1383, %v1385
    %v1388 = vld [vmem:[#allocation2 + $0xf0] sm:$0xff]
    %v1389 = vld [vmem:[#allocation2 + $0xf8] sm:$0xff]
    %v1390 = vld [vmem:[#allocation2 + $0x100] sm:$0xff]
    %v1391 = vld [vmem:[#allocation2 + $0x108] sm:$0xff]
    %v1392 = vld [vmem:[#allocation2 + $0x110] sm:$0xff]
    %v1393 = vld [vmem:[#allocation2 + $0x118] sm:$0xff]
    %1394 = vmatpush.msra.mxu0 %v478
    %1395 = vmatpush.msra.mxu0 %v474
    %1396 = vmatpush.msra.mxu0 %v470
    %1397 = vmatpush.msra.mxu0 %v466
    %1398 = vmatpush.msra.mxu0 %v462
    %1399 = vmatpush.msra.mxu0 %v458
    %1400 = vmatpush.msra.mxu0 %v454
    %1401 = vmatpush.msra.mxu0 %v450
    %1402 = vmatpush.msra.mxu0 %v446
    %1403 = vmatpush.msra.mxu0 %v442
    %1404 = vmatpush.msra.mxu0 %v438
    %1405 = vmatpush.msra.mxu0 %v434
    %1406 = vmatpush.msra.mxu0 %v430
    %1407 = vmatpush.msra.mxu0 %v426
    %1408 = vmatpush.msra.mxu0 %v422
    %1409 = vmatpush.msra.mxu0 %v418
    %1410 = vmatmul.f32.gmra.mxu0 %v1386
    %v1411 = vpop.f32.mrf.mxu0
    %v1412 = vadd.f32 0.0, %v1411
    %1413 = vmatmul.f32.gmra.mxu0 %v1387
    %v1414 = vpop.f32.mrf.mxu0
    %v1415 = vadd.f32 0.0, %v1414
    %1416 = vdwg.mxu0
    %1417 = vmatpush.msra.mxu0 %v479
    %1418 = vmatpush.msra.mxu0 %v475
    %1419 = vmatpush.msra.mxu0 %v471
    %1420 = vmatpush.msra.mxu0 %v467
    %1421 = vmatpush.msra.mxu0 %v463
    %1422 = vmatpush.msra.mxu0 %v459
    %1423 = vmatpush.msra.mxu0 %v455
    %1424 = vmatpush.msra.mxu0 %v451
    %1425 = vmatpush.msra.mxu0 %v447
    %1426 = vmatpush.msra.mxu0 %v443
    %1427 = vmatpush.msra.mxu0 %v439
    %1428 = vmatpush.msra.mxu0 %v435
    %1429 = vmatpush.msra.mxu0 %v431
    %1430 = vmatpush.msra.mxu0 %v427
    %1431 = vmatpush.msra.mxu0 %v423
    %1432 = vmatpush.msra.mxu0 %v419
    %1433 = vmatmul.f32.gmra.mxu0 %v1386
    %v1434 = vpop.f32.mrf.mxu0
    %v1435 = vadd.f32 0.0, %v1434
    %1436 = vmatmul.f32.gmra.mxu0 %v1387
    %v1437 = vpop.f32.mrf.mxu0
    %v1438 = vadd.f32 0.0, %v1437
    %1439 = vdwg.mxu0
    %1440 = vmatpush.msra.mxu0 %v480
    %1441 = vmatpush.msra.mxu0 %v476
    %1442 = vmatpush.msra.mxu0 %v472
    %1443 = vmatpush.msra.mxu0 %v468
    %1444 = vmatpush.msra.mxu0 %v464
    %1445 = vmatpush.msra.mxu0 %v460
    %1446 = vmatpush.msra.mxu0 %v456
    %1447 = vmatpush.msra.mxu0 %v452
    %1448 = vmatpush.msra.mxu0 %v448
    %1449 = vmatpush.msra.mxu0 %v444
    %1450 = vmatpush.msra.mxu0 %v440
    %1451 = vmatpush.msra.mxu0 %v436
    %1452 = vmatpush.msra.mxu0 %v432
    %1453 = vmatpush.msra.mxu0 %v428
    %1454 = vmatpush.msra.mxu0 %v424
    %1455 = vmatpush.msra.mxu0 %v420
    %1456 = vmatmul.f32.gmra.mxu0 %v1386
    %v1457 = vpop.f32.mrf.mxu0
    %v1458 = vadd.f32 0.0, %v1457
    %1459 = vmatmul.f32.gmra.mxu0 %v1387
    %v1460 = vpop.f32.mrf.mxu0
    %v1461 = vadd.f32 0.0, %v1460
    %1462 = vdwg.mxu0
    %1463 = vmatpush.msra.mxu0 %v481
    %1464 = vmatpush.msra.mxu0 %v477
    %1465 = vmatpush.msra.mxu0 %v473
    %1466 = vmatpush.msra.mxu0 %v469
    %1467 = vmatpush.msra.mxu0 %v465
    %1468 = vmatpush.msra.mxu0 %v461
    %1469 = vmatpush.msra.mxu0 %v457
    %1470 = vmatpush.msra.mxu0 %v453
    %1471 = vmatpush.msra.mxu0 %v449
    %1472 = vmatpush.msra.mxu0 %v445
    %1473 = vmatpush.msra.mxu0 %v441
    %1474 = vmatpush.msra.mxu0 %v437
    %1475 = vmatpush.msra.mxu0 %v433
    %1476 = vmatpush.msra.mxu0 %v429
    %1477 = vmatpush.msra.mxu0 %v425
    %1478 = vmatpush.msra.mxu0 %v421
    %1479 = vmatmul.f32.gmra.mxu0 %v1386
    %v1480 = vpop.f32.mrf.mxu0
    %v1481 = vadd.f32 0.0, %v1480
    %1482 = vmatmul.f32.gmra.mxu0 %v1387
    %v1483 = vpop.f32.mrf.mxu0
    %v1484 = vadd.f32 0.0, %v1483
    %1485 = vdwg.mxu0
    %v1486 = vadd.f32 %v1388, %v1412
    %v1487 = vadd.f32 %v1391, %v1415
    %v1488 = vxor.u32 %v1486, 2147483648
    %v1489 = vxor.u32 %v1487, 2147483648
    %v1490 = vmul.f32 %v1488, 1.442695
    %v1491 = vpow.pop %v1490
    %v1492 = vmul.f32 %v1489, 1.442695
    %v1493 = vpow.pop %v1492
    %v1494 = vadd.f32 %v1491, 1.0
    %v1495 = vadd.f32 %v1493, 1.0
    %v1496 = vrcp.pop %v1494
    %v1497 = vmul.f32 %v1494, %v1496
    %v1498 = vsub.f32 1.0, %v1497
    %v1499 = vmul.f32 %v1496, %v1498
    %v1500 = vadd.f32 %v1496, %v1499
    %vm1501 = vweird.f32 %v1494
    %vm1502 = vweird.f32 %v1496
    %vm1503 = vmor %vm1501, %vm1502
    %v1504 = vsel %vm1503, %v1496, %v1500
    %v1505 = vand.u32 2147483647, %v1494
    %vm1506 = vcmp.eq.f32.partialorder %v1505, 8.507059e+37
    %v1507 = vand.u32 %v1494, 2147483648
    %v1508 = vor.u32 1.1754944e-38, %v1507
    %v1509 = vsel %vm1506, %v1508, %v1504
    %v1510 = vmul.f32 1.0, %v1509
    %v1511 = vrcp.pop %v1495
    %v1512 = vmul.f32 %v1495, %v1511
    %v1513 = vsub.f32 1.0, %v1512
    %v1514 = vmul.f32 %v1511, %v1513
    %v1515 = vadd.f32 %v1511, %v1514
    %vm1516 = vweird.f32 %v1495
    %vm1517 = vweird.f32 %v1511
    %vm1518 = vmor %vm1516, %vm1517
    %v1519 = vsel %vm1518, %v1511, %v1515
    %v1520 = vand.u32 2147483647, %v1495
    %vm1521 = vcmp.eq.f32.partialorder %v1520, 8.507059e+37
    %v1522 = vand.u32 %v1495, 2147483648
    %v1523 = vor.u32 1.1754944e-38, %v1522
    %v1524 = vsel %vm1521, %v1523, %v1519
    %v1525 = vmul.f32 1.0, %v1524
    %v1526 = vadd.f32 %v1389, %v1435
    %v1527 = vadd.f32 %v1392, %v1438
    %v1528 = vxor.u32 %v1526, 2147483648
    %v1529 = vxor.u32 %v1527, 2147483648
    %v1530 = vmul.f32 %v1528, 1.442695
    %v1531 = vpow.pop %v1530
    %v1532 = vmul.f32 %v1529, 1.442695
    %v1533 = vpow.pop %v1532
    %v1534 = vadd.f32 %v1531, 1.0
    %v1535 = vadd.f32 %v1533, 1.0
    %v1536 = vrcp.pop %v1534
    %v1537 = vmul.f32 %v1534, %v1536
    %v1538 = vsub.f32 1.0, %v1537
    %v1539 = vmul.f32 %v1536, %v1538
    %v1540 = vadd.f32 %v1536, %v1539
    %vm1541 = vweird.f32 %v1534
    %vm1542 = vweird.f32 %v1536
    %vm1543 = vmor %vm1541, %vm1542
    %v1544 = vsel %vm1543, %v1536, %v1540
    %v1545 = vand.u32 2147483647, %v1534
    %vm1546 = vcmp.eq.f32.partialorder %v1545, 8.507059e+37
    %v1547 = vand.u32 %v1534, 2147483648
    %v1548 = vor.u32 1.1754944e-38, %v1547
    %v1549 = vsel %vm1546, %v1548, %v1544
    %v1550 = vmul.f32 1.0, %v1549
    %v1551 = vrcp.pop %v1535
    %v1552 = vmul.f32 %v1535, %v1551
    %v1553 = vsub.f32 1.0, %v1552
    %v1554 = vmul.f32 %v1551, %v1553
    %v1555 = vadd.f32 %v1551, %v1554
    %vm1556 = vweird.f32 %v1535
    %vm1557 = vweird.f32 %v1551
    %vm1558 = vmor %vm1556, %vm1557
    %v1559 = vsel %vm1558, %v1551, %v1555
    %v1560 = vand.u32 2147483647, %v1535
    %vm1561 = vcmp.eq.f32.partialorder %v1560, 8.507059e+37
    %v1562 = vand.u32 %v1535, 2147483648
    %v1563 = vor.u32 1.1754944e-38, %v1562
    %v1564 = vsel %vm1561, %v1563, %v1559
    %v1565 = vmul.f32 1.0, %v1564
    %v1566 = vmul.f32 %v1481, %v772
    %v1567 = vmul.f32 %v1484, %v772
    %v1568 = vadd.f32 %v1390, %v1566
    %v1569 = vadd.f32 %v1393, %v1567
    %v1570 = vadd.f32 %v1458, %v581
    %v1571 = vadd.f32 %v1461, %v581
    %v1572 = vmul.f32 %v1510, %v1570
    %v1573 = vmul.f32 %v1525, %v1571
    %v1574 = vadd.f32 %v1568, %v1572
    %v1575 = vadd.f32 %v1569, %v1573
    %v1576 = vtanh.pop %v1574
    %v1577 = vtanh.pop %v1575
    %v1578 = vsub.f32 1.0, %v1550
    %v1579 = vsub.f32 1.0, %v1565
    %v1580 = vmul.f32 %v1578, %v1576
    %v1581 = vmul.f32 %v1579, %v1577
    %v1582 = vmul.f32 %v1550, %v1386
    %v1583 = vmul.f32 %v1565, %v1387
    %v1584 = vadd.f32 %v1580, %v1582
    %v1585 = vadd.f32 %v1581, %v1583
    %1586 = vst [vmem:[#allocation4] sm:$0xff] %v1584
    %1587 = vst [vmem:[#allocation4 + $0x8] sm:$0xff] %v1585
    %v1588 = vld [vmem:[%s8] sm:$0x1]
    %v1590 = vperm.slane %v1588, 0
    %v1592 = vmul.f32 %v1584, %v1590
    %v1593 = vmul.f32 %v1585, %v1590
    %1594 = vadd.xlane.f32.xlu0 %v1592
    %v1595 = vpop.xlane.xlu0 %1594
    %1596 = vadd.xlane.f32.xlu0 %v1593
    %v1597 = vpop.xlane.xlu0 %1596
    %v1598 = vld [vmem:[#allocation3] sm:$0x1]
    %v1600 = vperm.slane %v1598, 0
    %v1602 = vadd.f32 %v1595, %v1600
    %v1603 = vadd.f32 %v1597, %v1600
    %vm1604 = vcmask 7168
    %1605 = vst.msk [vmem:[%s11] sm:$0xff] %vm1604, %v1602
    %1606 = vst.msk [vmem:[%s11 + $0x8] sm:$0xff] %vm1604, %v1603
    // Predicated region
    $region42: #{encoder_forward.1} parent=1 // pred_check
      _
    $region43: #{encoder_forward.1} parent=1 // pred_check_branch
      %1608 = sbr.rel (0) target = $region45
    $region44: #{encoder_forward.1} parent=1 // pred_region
      %1610 = vsyncadd [#allocation5], 0
      %s1611 = sshll.u32 [#allocation4], 4
      %s1612 = int_to_ptr.vmem [resolvable:$true] %s1611
      %s1613 = sshll.u32 %s10, 4
      %s1614 = int_to_ptr.hbm [resolvable:$true] %s1613
      %1619 = dma.vmem_to_hbm [thread:$0]  %s1612, 256, %s1614, [#allocation5], 128, 128, 8
    $region45: #{encoder_forward.1} parent=1 // pred_fallthru
      _
    // Predicated region
    $region46: #{encoder_forward.1} parent=1 // pred_check
      _
    $region47: #{encoder_forward.1} parent=1 // pred_check_branch
      %1621 = sbr.rel (0) target = $region49
    $region48: #{encoder_forward.1} parent=1 // pred_region
      _
    $region49: #{encoder_forward.1} parent=1 // pred_fallthru
      _
    // Predicated region
    $region50: #{encoder_forward.1} parent=1 // pred_check
      _
    $region51: #{encoder_forward.1} parent=1 // pred_check_branch
      %1623 = sbr.rel (0) target = $region53
    $region52: #{encoder_forward.1} parent=1 // pred_region
      %1625 = dma.done [#allocation5], 256
    $region53: #{encoder_forward.1} parent=1 // pred_fallthru
      _
    // Predicated region
    $region54: #{encoder_forward.1} parent=1 // pred_check
      _
    $region55: #{encoder_forward.1} parent=1 // pred_check_branch
      %1627 = sbr.rel (0) target = $region57
    $region56: #{encoder_forward.1} parent=1 // pred_region
      _
    $region57: #{encoder_forward.1} parent=1 // pred_fallthru
      _
    %1628 = vsyncpa [#allocation5], 1

</llo_original>
